<compile_context>
chip_gen: v6e
topology: v6e:2x2x1
jax: 0.10.0
libtpu: 0.0.40
codegen_flags: <defaults>
</compile_context>

<pallas_src>
import math
from types import SimpleNamespace

import numpy as np
import jax
import jax.numpy as jnp
from jax import lax
from jax.experimental import pallas as pl
from jax.experimental.pallas import tpu as pltpu


# ----------------------------------------------------------------------------- #
# Config / constants
# ----------------------------------------------------------------------------- #
VOCAB = 64
D_MODEL = 128
D_FF = 256
N_HEADS = 4
NUM_AC_CLASS = 7      # ACTC classes (num_class in module)
NUM_ARI_CLASS = 2     # pair / no-pair
NUM_ARTC_CLASS = 2    # link types
HEAD_PAD = 128        # lane-dense padded width for the fused classification heads

# pair2sequence[n] = ordered list of (i, j) pairs with i < j and j - i <= 9
pair2sequence = {
    n: [(i, j) for i in range(n) for j in range(i + 1, n) if (j - i) <= 9]
    for n in range(1, 13)
}
# bart_prefix_ac_map7[n]: deterministic prompt-token ids for a paragraph with n ACs
def _prompt_len(n):
    return 1 + 2 * n + (4 * len(pair2sequence[n]) if n >= 2 else 0)
bart_prefix_ac_map7 = {
    n: tuple((3 + i) % VOCAB for i in range(_prompt_len(n))) for n in range(1, 13)
}


def _round_up(x, m):
    return ((x + m - 1) // m) * m


# ----------------------------------------------------------------------------- #
# Pallas kernels
# ----------------------------------------------------------------------------- #
def linear_pallas(x, w, b, activation=None, tile_m=256):
    """y = act(x @ w + b).  x:(M,K) f32, w:(K,N), b:(N,).  bf16 MXU operands, f32 acc.
    Tiled over M so it stays pipelined and VMEM-bounded for any batch size."""
    M, K = x.shape
    N = w.shape[1]
    tm = min(tile_m, _round_up(M, 8))
    Mp = _round_up(M, tm)
    x = x.astype(jnp.float32)
    if Mp != M:
        x = jnp.concatenate([x, jnp.zeros((Mp - M, K), jnp.float32)], axis=0)
    w_b = w.astype(jnp.bfloat16)
    b_row = b.reshape(1, N).astype(jnp.float32)

    def kernel(x_ref, w_ref, b_ref, o_ref):
        acc = jnp.dot(x_ref[...].astype(jnp.bfloat16), w_ref[...],
                      preferred_element_type=jnp.float32) + b_ref[...]
        if activation == "relu":
            acc = jnp.maximum(acc, 0.0)
        o_ref[...] = acc

    out = pl.pallas_call(
        kernel,
        out_shape=jax.ShapeDtypeStruct((Mp, N), jnp.float32),
        grid=(Mp // tm,),
        in_specs=[
            pl.BlockSpec((tm, K), lambda i: (i, 0)),
            pl.BlockSpec((K, N), lambda i: (0, 0)),
            pl.BlockSpec((1, N), lambda i: (0, 0)),
        ],
        out_specs=pl.BlockSpec((tm, N), lambda i: (i, 0)),
        compiler_params=pltpu.CompilerParams(
            dimension_semantics=("parallel",),
            vmem_limit_bytes=32 * 1024 * 1024),
    )(x, w_b, b_row)
    return out[:M]


def mha_fused(x_q, x_kv, key_mask, p):
    """Fused multi-head attention with residual: out = x_q + Wo(MHA(x_q, x_kv)).
    x_q:(B,Lq,D) x_kv:(B,Lk,D) key_mask:(B,1,Lk) (1=keep,0=pad).
    Weights in p are bf16, biases are (1,D) f32.  One grid step per batch element,
    all heads processed inside the kernel (lane-dense (., 128) tiles)."""
    B, Lq, D = x_q.shape
    Lk = x_kv.shape[1]
    Dh = D // N_HEADS
    scale = 1.0 / math.sqrt(Dh)
    wq, bq = p["q"]; wk, bk = p["k"]; wv, bv = p["v"]; wo, bo = p["o"]

    def kernel(xq_ref, xkv_ref, m_ref,
               wq_ref, bq_ref, wk_ref, bk_ref, wv_ref, bv_ref, wo_ref, bo_ref,
               o_ref):
        xq = xq_ref[0]                                   # (Lq, D) f32
        xkv = xkv_ref[0]                                 # (Lk, D) f32
        xq_b = xq.astype(jnp.bfloat16)
        xkv_b = xkv.astype(jnp.bfloat16)
        q = jnp.dot(xq_b, wq_ref[...], preferred_element_type=jnp.float32) + bq_ref[...]
        k = jnp.dot(xkv_b, wk_ref[...], preferred_element_type=jnp.float32) + bk_ref[...]
        v = jnp.dot(xkv_b, wv_ref[...], preferred_element_type=jnp.float32) + bv_ref[...]
        add_mask = (1.0 - m_ref[0]) * -1e9               # (1, Lk) broadcast over rows

        outs = []
        for h in range(N_HEADS):                         # static unroll
            sl = slice(h * Dh, (h + 1) * Dh)
            qh = q[:, sl].astype(jnp.bfloat16)
            kh = k[:, sl].astype(jnp.bfloat16)
            vh = v[:, sl].astype(jnp.bfloat16)
            # q @ k^T expressed as a contraction (no in-kernel transpose)
            s = lax.dot_general(qh, kh, (((1,), (1,)), ((), ())),
                                preferred_element_type=jnp.float32) * scale
            s = s + add_mask
            s = s - jnp.max(s, axis=-1, keepdims=True)   # f32 softmax math
            pr = jnp.exp(s)
            pr = pr * pl.reciprocal(jnp.sum(pr, axis=-1, keepdims=True), approx=True)
            outs.append(jnp.dot(pr.astype(jnp.bfloat16), vh,
                                preferred_element_type=jnp.float32))
        ctx = jnp.concatenate(outs, axis=-1)             # (Lq, D)
        proj = jnp.dot(ctx.astype(jnp.bfloat16), wo_ref[...],
                       preferred_element_type=jnp.float32) + bo_ref[...]
        o_ref[0] = xq + proj                             # fused residual

    spec_q = pl.BlockSpec((1, Lq, D), lambda b: (b, 0, 0))
    spec_kv = pl.BlockSpec((1, Lk, D), lambda b: (b, 0, 0))
    spec_m = pl.BlockSpec((1, 1, Lk), lambda b: (b, 0, 0))
    spec_w = pl.BlockSpec((D, D), lambda b: (0, 0))
    spec_b = pl.BlockSpec((1, D), lambda b: (0, 0))

    return pl.pallas_call(
        kernel,
        out_shape=jax.ShapeDtypeStruct((B, Lq, D), jnp.float32),
        grid=(B,),
        in_specs=[spec_q, spec_kv, spec_m,
                  spec_w, spec_b, spec_w, spec_b, spec_w, spec_b, spec_w, spec_b],
        out_specs=pl.BlockSpec((1, Lq, D), lambda b: (b, 0, 0)),
        compiler_params=pltpu.CompilerParams(dimension_semantics=("parallel",)),
    )(x_q.astype(jnp.float32), x_kv.astype(jnp.float32),
      key_mask.astype(jnp.float32), wq, bq, wk, bk, wv, bv, wo, bo)


def ffn_fused(x, p):
    """out = x + W2(relu(W1 x + b1)) + b2, fused, one grid step per batch element."""
    B, L, D = x.shape
    w1, b1 = p["w1"]; w2, b2 = p["w2"]
    Dff = w1.shape[1]

    def kernel(x_ref, w1_ref, b1_ref, w2_ref, b2_ref, o_ref):
        xb = x_ref[0]
        h = jnp.dot(xb.astype(jnp.bfloat16), w1_ref[...],
                    preferred_element_type=jnp.float32) + b1_ref[...]
        h = jnp.maximum(h, 0.0)
        y = jnp.dot(h.astype(jnp.bfloat16), w2_ref[...],
                    preferred_element_type=jnp.float32) + b2_ref[...]
        o_ref[0] = xb + y                                # fused residual

    return pl.pallas_call(
        kernel,
        out_shape=jax.ShapeDtypeStruct((B, L, D), jnp.float32),
        grid=(B,),
        in_specs=[
            pl.BlockSpec((1, L, D), lambda b: (b, 0, 0)),
            pl.BlockSpec((D, Dff), lambda b: (0, 0)),
            pl.BlockSpec((1, Dff), lambda b: (0, 0)),
            pl.BlockSpec((Dff, D), lambda b: (0, 0)),
            pl.BlockSpec((1, D), lambda b: (0, 0)),
        ],
        out_specs=pl.BlockSpec((1, L, D), lambda b: (b, 0, 0)),
        compiler_params=pltpu.CompilerParams(dimension_semantics=("parallel",)),
    )(x.astype(jnp.float32), w1, b1, w2, b2)


def gcn_fused(enc_h, pool, adj, wg, bg):
    """gcn = relu(adj @ (pool @ enc_h) @ Wg + bg), fused per batch element.
    pool:(B,S,Lenc) mean-pooling matrix, adj:(B,S,S).  The D=128 contraction feeds the
    MXU; the tiny K=S adjacency mix rides along in the same kernel."""
    B, Lenc, D = enc_h.shape
    S = pool.shape[1]

    def kernel(h_ref, p_ref, a_ref, w_ref, b_ref, o_ref):
        spans = jnp.dot(p_ref[0].astype(jnp.bfloat16), h_ref[0].astype(jnp.bfloat16),
                        preferred_element_type=jnp.float32)          # (S, D) span means
        proj = jnp.dot(spans.astype(jnp.bfloat16), w_ref[...],
                       preferred_element_type=jnp.float32)           # (S, D), K=128
        mixed = jnp.dot(a_ref[0], proj, preferred_element_type=jnp.float32)  # (S, D), K=S
        o_ref[0] = jnp.maximum(mixed + b_ref[...], 0.0)

    return pl.pallas_call(
        kernel,
        out_shape=jax.ShapeDtypeStruct((B, S, D), jnp.float32),
        grid=(B,),
        in_specs=[
            pl.BlockSpec((1, Lenc, D), lambda b: (b, 0, 0)),
            pl.BlockSpec((1, S, Lenc), lambda b: (b, 0, 0)),
            pl.BlockSpec((1, S, S), lambda b: (b, 0, 0)),
            pl.BlockSpec((D, D), lambda b: (0, 0)),
            pl.BlockSpec((1, D), lambda b: (0, 0)),
        ],
        out_specs=pl.BlockSpec((1, S, D), lambda b: (b, 0, 0)),
        compiler_params=pltpu.CompilerParams(dimension_semantics=("parallel",)),
    )(enc_h.astype(jnp.float32), pool.astype(jnp.float32), adj.astype(jnp.float32),
      wg, bg)


# ----------------------------------------------------------------------------- #
# Model glue
# ----------------------------------------------------------------------------- #
def get_index_positions(lst, val):
    return [i for i, v in enumerate(lst) if v == val]


def cross_entropy_none(logits, labels, ignore_index=None):
    """Per-element CE (reduction='none'); ignored entries contribute 0 (torch semantics)."""
    logz = jax.nn.logsumexp(logits, axis=-1)
    safe = jnp.clip(labels, 0, logits.shape[-1] - 1)
    picked = jnp.take_along_axis(logits, safe[:, None], axis=-1)[:, 0]
    loss = logz - picked
    if ignore_index is not None:
        loss = jnp.where(labels == ignore_index, 0.0, loss)
    return loss


def init_params(key):
    ks = iter(jax.random.split(key, 64))

    def dense(i, o):
        return (0.02 * jax.random.normal(next(ks), (i, o), jnp.float32),
                jnp.zeros((o,), jnp.float32))

    def attn():
        return {"q": dense(D_MODEL, D_MODEL), "k": dense(D_MODEL, D_MODEL),
                "v": dense(D_MODEL, D_MODEL), "o": dense(D_MODEL, D_MODEL)}

    return {
        "embed": 0.02 * jax.random.normal(next(ks), (VOCAB, D_MODEL), jnp.float32),
        "enc_attn": attn(),
        "enc_ffn": {"w1": dense(D_MODEL, D_FF), "w2": dense(D_FF, D_MODEL)},
        "dec_self_attn": attn(),
        "dec_cross_attn": attn(),
        "dec_ffn": {"w1": dense(D_MODEL, D_FF), "w2": dense(D_FF, D_MODEL)},
        "gcn": dense(D_MODEL, D_MODEL),
        "actc_head": dense(D_MODEL, NUM_AC_CLASS),
        "ari_head": dense(D_MODEL, NUM_ARI_CLASS),
        "artc_head": dense(D_MODEL, NUM_ARTC_CLASS),
    }


class JointPrompt:
    """Synthetic prompt encoder-decoder standing in for the (unavailable) BART JointPrompt."""
    # TODO(synk): original JointPrompt (BART backbone) weights/architecture not provided;
    # this is a deterministic small encoder-decoder with the same I/O contract.

    def __init__(self, config, params):
        self.config = config

        def prep(wb):
            w, b = wb
            return (w.astype(jnp.bfloat16), b.reshape(1, -1).astype(jnp.float32))

        def prep_attn(d):
            return {k: prep(v) for k, v in d.items()}

        self.embed = params["embed"]
        self.enc_attn = prep_attn(params["enc_attn"])
        self.enc_ffn = {k: prep(v) for k, v in params["enc_ffn"].items()}
        self.dec_self_attn = prep_attn(params["dec_self_attn"])
        self.dec_cross_attn = prep_attn(params["dec_cross_attn"])
        self.dec_ffn = {k: prep(v) for k, v in params["dec_ffn"].items()}
        self.gcn_w, self.gcn_b = prep(params["gcn"])

        # Combined, lane-padded (D, 128) classification head: [ACTC | ARI | ARTC | 0...]
        w_cat = jnp.concatenate([params["actc_head"][0], params["ari_head"][0],
                                 params["artc_head"][0]], axis=1)
        b_cat = jnp.concatenate([params["actc_head"][1], params["ari_head"][1],
                                 params["artc_head"][1]], axis=0)
        nh = w_cat.shape[1]
        self.head_w = jnp.zeros((D_MODEL, HEAD_PAD), jnp.float32).at[:, :nh].set(w_cat)
        self.head_b = jnp.zeros((HEAD_PAD,), jnp.float32).at[:nh].set(b_cat)

    def __call__(self, input_ids, AC_spans_list, prompt_ids, adjs, span_num,
                 attention_mask, decoder_attention_mask, corss_attention_mask, labels):
        true_ac, true_ar, true_artc = labels
        B, Lenc = input_ids.shape
        Lp = prompt_ids.shape[1]
        D = D_MODEL

        # key-side masks, one (B,1,Lk) block per batch element (no per-head broadcast)
        enc_key_mask = attention_mask.astype(jnp.float32).reshape(B, 1, Lenc)
        dec_key_mask = decoder_attention_mask.astype(jnp.float32).reshape(B, 1, Lp)
        cross_key_mask = corss_attention_mask.astype(jnp.float32).reshape(B, 1, Lenc)

        # ---- encoder: embed -> fused (self-attn + residual) -> fused (FFN + residual) ----
        enc_h = self.embed[input_ids]
        enc_h = mha_fused(enc_h, enc_h, enc_key_mask, self.enc_attn)
        enc_h = ffn_fused(enc_h, self.enc_ffn)

        # ---- decoder over prompt: fused self-attn, fused cross-attn, fused FFN ----
        dec_h = self.embed[prompt_ids]
        dec_h = mha_fused(dec_h, dec_h, dec_key_mask, self.dec_self_attn)
        dec_h = mha_fused(dec_h, enc_h, cross_key_mask, self.dec_cross_attn)
        dec_h = ffn_fused(dec_h, self.dec_ffn)

        # ---- AC span pooling (as a pooling matrix) + adjacency mix + GCN, one kernel ----
        pool = np.zeros((B, span_num, Lenc), np.float32)
        for bi, spans in enumerate(AC_spans_list):
            for si, (s, e) in enumerate(spans):
                pool[bi, si, s:e + 1] = 1.0 / float(e - s + 1)
        gcn = gcn_fused(enc_h, jnp.asarray(pool), adjs, self.gcn_w, self.gcn_b)

        # ---- heads: one lane-dense fused matmul for ACTC/ARI/ARTC ----
        base = 1 + 2 * span_num
        actc_reps = dec_h[:, 1:base, :].reshape(B, span_num, 2, D).mean(axis=2) + gcn
        reps = [actc_reps.reshape(-1, D)]
        if span_num > 1:
            pn = len(pair2sequence[span_num])
            ari_reps = dec_h[:, base:base + 2 * pn, :].reshape(B, pn, 2, D).mean(axis=2)
            artc_reps = dec_h[:, base + 2 * pn:base + 4 * pn, :].reshape(B, pn, 2, D).mean(axis=2)
            reps += [ari_reps.reshape(-1, D), artc_reps.reshape(-1, D)]
        reps_all = jnp.concatenate(reps, axis=0)
        logits_all = linear_pallas(reps_all, self.head_w, self.head_b)

        n_actc = B * span_num
        actc_logits = logits_all[:n_actc, :NUM_AC_CLASS]
        actc_loss = cross_entropy_none(actc_logits, true_ac)

        if span_num > 1:
            n_pair = B * pn
            c0 = NUM_AC_CLASS
            ari_logits = logits_all[n_actc:n_actc + n_pair, c0:c0 + NUM_ARI_CLASS]
            artc_logits = logits_all[n_actc + n_pair:n_actc + 2 * n_pair,
                                     c0 + NUM_ARI_CLASS:c0 + NUM_ARI_CLASS + NUM_ARTC_CLASS]
            ari_loss = cross_entropy_none(ari_logits, true_ar)
            artc_loss = cross_entropy_none(artc_logits, true_artc, ignore_index=-100)
        else:
            ari_loss = None
            artc_loss = None

        return {"ml_loss": None, "actc_loss": actc_loss,
                "ari_loss": ari_loss, "artc_loss": artc_loss}


class E2EModel:
    def __init__(self, config, params):
        self.config = config
        self.jp_model = JointPrompt(config, params)
        self.num_class = 7
        self.max_ac_num = config.max_AC_num
        self.max_pair_num = 63
        self.pair_num_map = {1: 0, 2: 1, 3: 3, 4: 6, 5: 10, 6: 15, 7: 21, 8: 28,
                             9: 36, 10: 45, 11: 54, 12: 63}
        self.mask_type = config.mask_type

    def forward(self, para_tokens_ids_list, AC_spans_list, whole_graph_list,
                true_AC_types_list=None, true_AR_pairs_list=None,
                true_AR_link_types_list=None, mode="train"):
        if mode == "train":
            return self.train_mode(para_tokens_ids_list, AC_spans_list, whole_graph_list,
                                   true_AC_types_list, true_AR_pairs_list,
                                   true_AR_link_types_list)
        raise ValueError("only train mode implemented in this synthetic port")
        # TODO(synk): val_mode (predict path) follows the same kernels; omitted for brevity.

    def padding_and_mask_forpara(self, ids_list):
        max_len = max(len(x) for x in ids_list)
        mask_list, ids_padding_list = [], []
        for ids in ids_list:
            mask = [1] * len(ids) + [0] * (max_len - len(ids))
            ids = ids + [0] * (max_len - len(ids))
            mask_list.append(mask)
            ids_padding_list.append(ids)
        return ids_padding_list, mask_list

    def contruct_cross_mask(self, mask_list, span_list, tokens_num_list, span_num):
        if self.mask_type == "full":
            return jnp.array(mask_list, dtype=jnp.float32)
        raise ValueError
        # TODO(synk): 'global_sys' mask construction is host-side numpy bookkeeping; not ported.

    def _pair2sequence(self, pair_list, span_num, pair_type_list):
        pairs_num = len(pair2sequence[span_num])
        pairs_true, pair_type_true = [], []
        pair_type_num = 0
        seq = list(pair2sequence[span_num])
        for i in range(len(pair_list)):
            true_indices, tmp_types = [], []
            for j, x in enumerate(pair_list[i]):
                if max(x) - min(x) <= 9:
                    true_indices.append(seq.index((min(x), max(x))))
                    tmp_types.append(pair_type_list[i][j])
            temp = [0] * pairs_num
            temp_type = [-100] * pairs_num
            for idx, t in zip(true_indices, tmp_types):
                temp[idx] = 1
                temp_type[idx] = int(t)
            pairs_true.extend(temp)
            pair_type_true.extend(temp_type)
            pair_type_num += len(tmp_types)
        return (jnp.array(pairs_true, dtype=jnp.int32),
                jnp.array(pair_type_true, dtype=jnp.int32),
                pair_type_num)

    def train_mode(self, para_tokens_ids_list, AC_spans_list, whole_graph_list,
                   true_AC_types_list, true_AR_pairs_list, true_AR_link_types_list):
        # TODO(synk): shape-bucketing / jitting the per-group forward would cut
        # recompiles for new (span_num, max_len) combos; host-side only, not done here.
        span_num_list = [len(s) for s in AC_spans_list]
        span_num_set = sorted(set(span_num_list))
        loss_mlm_list, loss_actc_list, loss_ari_list, loss_artc_list = [], [], [], []
        all_pair_type_num = 0

        for span_num in span_num_set:
            para_index = get_index_positions(span_num_list, span_num)
            group_tokens = [para_tokens_ids_list[i] for i in para_index]
            AC_group_spans = [AC_spans_list[i] for i in para_index]
            group_whole_graphs = [whole_graph_list[i] for i in para_index]
            true_group_AC_types = [true_AC_types_list[i] for i in para_index]
            true_group_AC_types_label = jnp.array(true_group_AC_types, jnp.int32).reshape(-1)

            if span_num > 1:
                true_AR_group_pairs = [true_AR_pairs_list[i] for i in para_index]
                true_AR_link_group_types = [true_AR_link_types_list[i] for i in para_index]
                true_group_AR_label, true_group_AR_type_label, ptn = self._pair2sequence(
                    true_AR_group_pairs, span_num, true_AR_link_group_types)
                all_pair_type_num += ptn
            else:
                true_group_AR_label = None
                true_group_AR_type_label = None

            input_ids_list, tokens_num_list, prompt_ids_list = [], [], []
            for tokens_ids_list in group_tokens:
                tokens_num_list.append(len(tokens_ids_list))
                input_ids_list.append(list(tokens_ids_list))
                prompt_ids_list.append(list(bart_prefix_ac_map7[span_num]))
            input_ids_list, mask_list = self.padding_and_mask_forpara(input_ids_list)
            prompt_ids = jnp.array(prompt_ids_list, dtype=jnp.int32)
            cross_mask = self.contruct_cross_mask(mask_list, AC_group_spans,
                                                  tokens_num_list, span_num)

            group_output = self.jp_model(
                input_ids=jnp.array(input_ids_list, dtype=jnp.int32),
                AC_spans_list=AC_group_spans,
                prompt_ids=prompt_ids,
                adjs=jnp.array(group_whole_graphs, dtype=jnp.float32),
                span_num=span_num,
                attention_mask=jnp.array(mask_list, dtype=jnp.float32),
                decoder_attention_mask=jnp.ones_like(prompt_ids),
                corss_attention_mask=cross_mask,
                labels=(true_group_AC_types_label, true_group_AR_label,
                        true_group_AR_type_label))

            if group_output["ml_loss"] is not None:
                loss_mlm_list.append(group_output["ml_loss"])
            loss_actc_list.append(group_output["actc_loss"])
            if group_output["ari_loss"] is not None:
                loss_ari_list.append(group_output["ari_loss"])
            if group_output["artc_loss"] is not None:
                loss_artc_list.append(group_output["artc_loss"])

        all_pair_type_num = 1 if all_pair_type_num == 0 else all_pair_type_num
        ml_loss = (jnp.concatenate(loss_mlm_list).mean() if loss_mlm_list
                   else jnp.array(0.0, jnp.float32))
        actc_loss = jnp.concatenate(loss_actc_list).mean()
        ari_loss = (jnp.concatenate(loss_ari_list).mean() if loss_ari_list
                    else jnp.array(0.0, jnp.float32))
        artc_loss = (jnp.concatenate(loss_artc_list).sum() / all_pair_type_num
                     if loss_artc_list else jnp.array(0.0, jnp.float32))
        return ml_loss, actc_loss, ari_loss, artc_loss


# ----------------------------------------------------------------------------- #
if __name__ == "__main__":
    key = jax.random.PRNGKey(0)
    params = init_params(jax.random.PRNGKey(42))

    config = SimpleNamespace(max_AC_num=12, mask_type="full")
    model = E2EModel(config, params)

    # deterministic tiny dataset: 4 paragraphs, two with 2 ACs, two with 3 ACs
    kt = jax.random.split(key, 8)
    lens = [10, 12, 11, 13]
    para_tokens_ids_list = [
        [int(t) for t in jax.random.randint(kt[i], (lens[i],), 4, VOCAB)]
        for i in range(4)
    ]
    AC_spans_list = [
        [(1, 3), (5, 8)],
        [(0, 2), (4, 6), (8, 10)],
        [(2, 4), (6, 9)],
        [(1, 2), (5, 7), (9, 11)],
    ]
    whole_graph_list = [
        [[float((i + j) % 2) for j in range(len(s))] for i in range(len(s))]
        for s in AC_spans_list
    ]
    true_AC_types_list = [[0, 3], [1, 2, 6], [4, 5], [0, 1, 2]]
    true_AR_pairs_list = [[(0, 1)], [(0, 1), (1, 2)], [(0, 1)], [(0, 2)]]
    true_AR_link_types_list = [[0], [1, 0], [1], [0]]

    ml_loss, actc_loss, ari_loss, artc_loss = model.forward(
        para_tokens_ids_list, AC_spans_list, whole_graph_list,
        true_AC_types_list, true_AR_pairs_list, true_AR_link_types_list, mode="train")

    jax.block_until_ready((ml_loss, actc_loss, ari_loss, artc_loss))
    print("KERNEL_OK")
</pallas_src>

<mosaic_0001>
module attributes {stable_mosaic.version = 11 : i64} {
  func.func @kernel(%arg0: i32, %arg1: memref<1x11x128xf32, #tpu.memory_space<vmem>>, %arg2: memref<1x11x128xf32, #tpu.memory_space<vmem>>, %arg3: memref<1x1x11xf32, #tpu.memory_space<vmem>>, %arg4: memref<128x128xbf16, #tpu.memory_space<vmem>>, %arg5: memref<1x128xf32, #tpu.memory_space<vmem>>, %arg6: memref<128x128xbf16, #tpu.memory_space<vmem>>, %arg7: memref<1x128xf32, #tpu.memory_space<vmem>>, %arg8: memref<128x128xbf16, #tpu.memory_space<vmem>>, %arg9: memref<1x128xf32, #tpu.memory_space<vmem>>, %arg10: memref<128x128xbf16, #tpu.memory_space<vmem>>, %arg11: memref<1x128xf32, #tpu.memory_space<vmem>>, %arg12: memref<1x11x128xf32, #tpu.memory_space<vmem>>) attributes {dimension_semantics = [#tpu.dimension_semantics<parallel>], iteration_bounds = array<i64: 2>, scalar_prefetch = 0 : i64, scratch_operands = 0 : i64, tpu.core_type = #tpu.core_type<tc>, window_params = [{transform_indices = @transform_0, window_bounds = array<i64: 1, 11, 128>}, {transform_indices = @transform_1, window_bounds = array<i64: 1, 11, 128>}, {transform_indices = @transform_2, window_bounds = array<i64: 1, 1, 11>}, {pipeline_mode = #tpu.pipeline_mode<synchronous>, transform_indices = @transform_3, window_bounds = array<i64: 128, 128>}, {pipeline_mode = #tpu.pipeline_mode<synchronous>, transform_indices = @transform_4, window_bounds = array<i64: 1, 128>}, {pipeline_mode = #tpu.pipeline_mode<synchronous>, transform_indices = @transform_5, window_bounds = array<i64: 128, 128>}, {pipeline_mode = #tpu.pipeline_mode<synchronous>, transform_indices = @transform_6, window_bounds = array<i64: 1, 128>}, {pipeline_mode = #tpu.pipeline_mode<synchronous>, transform_indices = @transform_7, window_bounds = array<i64: 128, 128>}, {pipeline_mode = #tpu.pipeline_mode<synchronous>, transform_indices = @transform_8, window_bounds = array<i64: 1, 128>}, {pipeline_mode = #tpu.pipeline_mode<synchronous>, transform_indices = @transform_9, window_bounds = array<i64: 128, 128>}, {pipeline_mode = #tpu.pipeline_mode<synchronous>, transform_indices = @transform_10, window_bounds = array<i64: 1, 128>}, {transform_indices = @transform_11, window_bounds = array<i64: 1, 11, 128>}]} {
    %c0 = arith.constant 0 : index
    %c0_0 = arith.constant 0 : index
    %c0_1 = arith.constant 0 : index
    %0 = vector.load %arg1[%c0, %c0_0, %c0_1] : memref<1x11x128xf32, #tpu.memory_space<vmem>>, vector<1x11x128xf32>
    %1 = vector.shape_cast %0 : vector<1x11x128xf32> to vector<11x128xf32>
    %c0_2 = arith.constant 0 : index
    %c0_3 = arith.constant 0 : index
    %c0_4 = arith.constant 0 : index
    %2 = vector.load %arg2[%c0_2, %c0_3, %c0_4] : memref<1x11x128xf32, #tpu.memory_space<vmem>>, vector<1x11x128xf32>
    %3 = vector.shape_cast %2 : vector<1x11x128xf32> to vector<11x128xf32>
    %4 = arith.truncf %1 : vector<11x128xf32> to vector<11x128xbf16>
    %5 = arith.truncf %3 : vector<11x128xf32> to vector<11x128xbf16>
    %c0_5 = arith.constant 0 : index
    %c0_6 = arith.constant 0 : index
    %6 = vector.load %arg4[%c0_5, %c0_6] : memref<128x128xbf16, #tpu.memory_space<vmem>>, vector<128x128xbf16>
    %cst = arith.constant dense<0.000000e+00> : vector<11x128xf32>
    %7 = tpu.matmul %4, %6, %cst {dimension_numbers = #tpu.dot_dimension_numbers<[1], [0], [0], [1], [0, 0, 1, 1], [], []>} : vector<11x128xbf16>, vector<128x128xbf16>, vector<11x128xf32> -> vector<11x128xf32>
    %c0_7 = arith.constant 0 : index
    %c0_8 = arith.constant 0 : index
    %8 = vector.load %arg5[%c0_7, %c0_8] : memref<1x128xf32, #tpu.memory_space<vmem>>, vector<1x128xf32>
    %9 = vector.broadcast %8 : vector<1x128xf32> to vector<11x128xf32>
    %10 = arith.addf %7, %9 : vector<11x128xf32>
    %c0_9 = arith.constant 0 : index
    %c0_10 = arith.constant 0 : index
    %11 = vector.load %arg6[%c0_9, %c0_10] : memref<128x128xbf16, #tpu.memory_space<vmem>>, vector<128x128xbf16>
    %cst_11 = arith.constant dense<0.000000e+00> : vector<11x128xf32>
    %12 = tpu.matmul %5, %11, %cst_11 {dimension_numbers = #tpu.dot_dimension_numbers<[1], [0], [0], [1], [0, 0, 1, 1], [], []>} : vector<11x128xbf16>, vector<128x128xbf16>, vector<11x128xf32> -> vector<11x128xf32>
    %c0_12 = arith.constant 0 : index
    %c0_13 = arith.constant 0 : index
    %13 = vector.load %arg7[%c0_12, %c0_13] : memref<1x128xf32, #tpu.memory_space<vmem>>, vector<1x128xf32>
    %14 = vector.broadcast %13 : vector<1x128xf32> to vector<11x128xf32>
    %15 = arith.addf %12, %14 : vector<11x128xf32>
    %c0_14 = arith.constant 0 : index
    %c0_15 = arith.constant 0 : index
    %16 = vector.load %arg8[%c0_14, %c0_15] : memref<128x128xbf16, #tpu.memory_space<vmem>>, vector<128x128xbf16>
    %cst_16 = arith.constant dense<0.000000e+00> : vector<11x128xf32>
    %17 = tpu.matmul %5, %16, %cst_16 {dimension_numbers = #tpu.dot_dimension_numbers<[1], [0], [0], [1], [0, 0, 1, 1], [], []>} : vector<11x128xbf16>, vector<128x128xbf16>, vector<11x128xf32> -> vector<11x128xf32>
    %c0_17 = arith.constant 0 : index
    %c0_18 = arith.constant 0 : index
    %18 = vector.load %arg9[%c0_17, %c0_18] : memref<1x128xf32, #tpu.memory_space<vmem>>, vector<1x128xf32>
    %19 = vector.broadcast %18 : vector<1x128xf32> to vector<11x128xf32>
    %20 = arith.addf %17, %19 : vector<11x128xf32>
    %c0_19 = arith.constant 0 : index
    %c0_20 = arith.constant 0 : index
    %c0_21 = arith.constant 0 : index
    %21 = vector.load %arg3[%c0_19, %c0_20, %c0_21] : memref<1x1x11xf32, #tpu.memory_space<vmem>>, vector<1x1x11xf32>
    %22 = vector.shape_cast %21 : vector<1x1x11xf32> to vector<1x11xf32>
    %cst_22 = arith.constant 1.000000e+00 : f32
    %23 = vector.broadcast %cst_22 : f32 to vector<1x11xf32>
    %24 = arith.subf %23, %22 : vector<1x11xf32>
    %cst_23 = arith.constant -1.000000e+09 : f32
    %25 = vector.broadcast %cst_23 : f32 to vector<1x11xf32>
    %26 = arith.mulf %24, %25 : vector<1x11xf32>
    %27 = vector.extract_strided_slice %10 {offsets = [0, 0], sizes = [11, 32], strides = [1, 1]} : vector<11x128xf32> to vector<11x32xf32>
    %28 = arith.truncf %27 : vector<11x32xf32> to vector<11x32xbf16>
    %29 = vector.extract_strided_slice %15 {offsets = [0, 0], sizes = [11, 32], strides = [1, 1]} : vector<11x128xf32> to vector<11x32xf32>
    %30 = arith.truncf %29 : vector<11x32xf32> to vector<11x32xbf16>
    %31 = vector.extract_strided_slice %20 {offsets = [0, 0], sizes = [11, 32], strides = [1, 1]} : vector<11x128xf32> to vector<11x32xf32>
    %32 = arith.truncf %31 : vector<11x32xf32> to vector<11x32xbf16>
    %cst_24 = arith.constant dense<0.000000e+00> : vector<11x11xf32>
    %33 = tpu.matmul %28, %30, %cst_24 {dimension_numbers = #tpu.dot_dimension_numbers<[1], [1], [0], [0], [0, 0, 1, 0], [], []>} : vector<11x32xbf16>, vector<11x32xbf16>, vector<11x11xf32> -> vector<11x11xf32>
    %cst_25 = arith.constant 0.176776692 : f32
    %34 = vector.broadcast %cst_25 : f32 to vector<11x11xf32>
    %35 = arith.mulf %33, %34 : vector<11x11xf32>
    %36 = vector.broadcast %26 : vector<1x11xf32> to vector<11x11xf32>
    %37 = arith.addf %35, %36 : vector<11x11xf32>
    %cst_26 = arith.constant dense<0xFF800000> : vector<11xf32>
    %38 = vector.multi_reduction <maximumf>, %37, %cst_26 [1] : vector<11x11xf32> to vector<11xf32>
    %39 = vector.shape_cast %38 : vector<11xf32> to vector<11x1xf32>
    %40 = vector.broadcast %39 : vector<11x1xf32> to vector<11x11xf32>
    %41 = arith.subf %37, %40 : vector<11x11xf32>
    %42 = math.exp %41 : vector<11x11xf32>
    %cst_27 = arith.constant dense<0.000000e+00> : vector<11xf32>
    %43 = vector.multi_reduction <add>, %42, %cst_27 [1] : vector<11x11xf32> to vector<11xf32>
    %44 = vector.shape_cast %43 : vector<11xf32> to vector<11x1xf32>
    %45 = tpu.reciprocal %44 {approx = true} : vector<11x1xf32> -> vector<11x1xf32>
    %46 = vector.broadcast %45 : vector<11x1xf32> to vector<11x11xf32>
    %47 = arith.mulf %42, %46 : vector<11x11xf32>
    %48 = arith.truncf %47 : vector<11x11xf32> to vector<11x11xbf16>
    %cst_28 = arith.constant dense<0.000000e+00> : vector<11x32xf32>
    %49 = tpu.matmul %48, %32, %cst_28 {dimension_numbers = #tpu.dot_dimension_numbers<[1], [0], [0], [1], [0, 0, 1, 1], [], []>} : vector<11x11xbf16>, vector<11x32xbf16>, vector<11x32xf32> -> vector<11x32xf32>
    %50 = vector.extract_strided_slice %10 {offsets = [0, 32], sizes = [11, 32], strides = [1, 1]} : vector<11x128xf32> to vector<11x32xf32>
    %51 = arith.truncf %50 : vector<11x32xf32> to vector<11x32xbf16>
    %52 = vector.extract_strided_slice %15 {offsets = [0, 32], sizes = [11, 32], strides = [1, 1]} : vector<11x128xf32> to vector<11x32xf32>
    %53 = arith.truncf %52 : vector<11x32xf32> to vector<11x32xbf16>
    %54 = vector.extract_strided_slice %20 {offsets = [0, 32], sizes = [11, 32], strides = [1, 1]} : vector<11x128xf32> to vector<11x32xf32>
    %55 = arith.truncf %54 : vector<11x32xf32> to vector<11x32xbf16>
    %cst_29 = arith.constant dense<0.000000e+00> : vector<11x11xf32>
    %56 = tpu.matmul %51, %53, %cst_29 {dimension_numbers = #tpu.dot_dimension_numbers<[1], [1], [0], [0], [0, 0, 1, 0], [], []>} : vector<11x32xbf16>, vector<11x32xbf16>, vector<11x11xf32> -> vector<11x11xf32>
    %cst_30 = arith.constant 0.176776692 : f32
    %57 = vector.broadcast %cst_30 : f32 to vector<11x11xf32>
    %58 = arith.mulf %56, %57 : vector<11x11xf32>
    %59 = vector.broadcast %26 : vector<1x11xf32> to vector<11x11xf32>
    %60 = arith.addf %58, %59 : vector<11x11xf32>
    %cst_31 = arith.constant dense<0xFF800000> : vector<11xf32>
    %61 = vector.multi_reduction <maximumf>, %60, %cst_31 [1] : vector<11x11xf32> to vector<11xf32>
    %62 = vector.shape_cast %61 : vector<11xf32> to vector<11x1xf32>
    %63 = vector.broadcast %62 : vector<11x1xf32> to vector<11x11xf32>
    %64 = arith.subf %60, %63 : vector<11x11xf32>
    %65 = math.exp %64 : vector<11x11xf32>
    %cst_32 = arith.constant dense<0.000000e+00> : vector<11xf32>
    %66 = vector.multi_reduction <add>, %65, %cst_32 [1] : vector<11x11xf32> to vector<11xf32>
    %67 = vector.shape_cast %66 : vector<11xf32> to vector<11x1xf32>
    %68 = tpu.reciprocal %67 {approx = true} : vector<11x1xf32> -> vector<11x1xf32>
    %69 = vector.broadcast %68 : vector<11x1xf32> to vector<11x11xf32>
    %70 = arith.mulf %65, %69 : vector<11x11xf32>
    %71 = arith.truncf %70 : vector<11x11xf32> to vector<11x11xbf16>
    %cst_33 = arith.constant dense<0.000000e+00> : vector<11x32xf32>
    %72 = tpu.matmul %71, %55, %cst_33 {dimension_numbers = #tpu.dot_dimension_numbers<[1], [0], [0], [1], [0, 0, 1, 1], [], []>} : vector<11x11xbf16>, vector<11x32xbf16>, vector<11x32xf32> -> vector<11x32xf32>
    %73 = vector.extract_strided_slice %10 {offsets = [0, 64], sizes = [11, 32], strides = [1, 1]} : vector<11x128xf32> to vector<11x32xf32>
    %74 = arith.truncf %73 : vector<11x32xf32> to vector<11x32xbf16>
    %75 = vector.extract_strided_slice %15 {offsets = [0, 64], sizes = [11, 32], strides = [1, 1]} : vector<11x128xf32> to vector<11x32xf32>
    %76 = arith.truncf %75 : vector<11x32xf32> to vector<11x32xbf16>
    %77 = vector.extract_strided_slice %20 {offsets = [0, 64], sizes = [11, 32], strides = [1, 1]} : vector<11x128xf32> to vector<11x32xf32>
    %78 = arith.truncf %77 : vector<11x32xf32> to vector<11x32xbf16>
    %cst_34 = arith.constant dense<0.000000e+00> : vector<11x11xf32>
    %79 = tpu.matmul %74, %76, %cst_34 {dimension_numbers = #tpu.dot_dimension_numbers<[1], [1], [0], [0], [0, 0, 1, 0], [], []>} : vector<11x32xbf16>, vector<11x32xbf16>, vector<11x11xf32> -> vector<11x11xf32>
    %cst_35 = arith.constant 0.176776692 : f32
    %80 = vector.broadcast %cst_35 : f32 to vector<11x11xf32>
    %81 = arith.mulf %79, %80 : vector<11x11xf32>
    %82 = vector.broadcast %26 : vector<1x11xf32> to vector<11x11xf32>
    %83 = arith.addf %81, %82 : vector<11x11xf32>
    %cst_36 = arith.constant dense<0xFF800000> : vector<11xf32>
    %84 = vector.multi_reduction <maximumf>, %83, %cst_36 [1] : vector<11x11xf32> to vector<11xf32>
    %85 = vector.shape_cast %84 : vector<11xf32> to vector<11x1xf32>
    %86 = vector.broadcast %85 : vector<11x1xf32> to vector<11x11xf32>
    %87 = arith.subf %83, %86 : vector<11x11xf32>
    %88 = math.exp %87 : vector<11x11xf32>
    %cst_37 = arith.constant dense<0.000000e+00> : vector<11xf32>
    %89 = vector.multi_reduction <add>, %88, %cst_37 [1] : vector<11x11xf32> to vector<11xf32>
    %90 = vector.shape_cast %89 : vector<11xf32> to vector<11x1xf32>
    %91 = tpu.reciprocal %90 {approx = true} : vector<11x1xf32> -> vector<11x1xf32>
    %92 = vector.broadcast %91 : vector<11x1xf32> to vector<11x11xf32>
    %93 = arith.mulf %88, %92 : vector<11x11xf32>
    %94 = arith.truncf %93 : vector<11x11xf32> to vector<11x11xbf16>
    %cst_38 = arith.constant dense<0.000000e+00> : vector<11x32xf32>
    %95 = tpu.matmul %94, %78, %cst_38 {dimension_numbers = #tpu.dot_dimension_numbers<[1], [0], [0], [1], [0, 0, 1, 1], [], []>} : vector<11x11xbf16>, vector<11x32xbf16>, vector<11x32xf32> -> vector<11x32xf32>
    %96 = vector.extract_strided_slice %10 {offsets = [0, 96], sizes = [11, 32], strides = [1, 1]} : vector<11x128xf32> to vector<11x32xf32>
    %97 = arith.truncf %96 : vector<11x32xf32> to vector<11x32xbf16>
    %98 = vector.extract_strided_slice %15 {offsets = [0, 96], sizes = [11, 32], strides = [1, 1]} : vector<11x128xf32> to vector<11x32xf32>
    %99 = arith.truncf %98 : vector<11x32xf32> to vector<11x32xbf16>
    %100 = vector.extract_strided_slice %20 {offsets = [0, 96], sizes = [11, 32], strides = [1, 1]} : vector<11x128xf32> to vector<11x32xf32>
    %101 = arith.truncf %100 : vector<11x32xf32> to vector<11x32xbf16>
    %cst_39 = arith.constant dense<0.000000e+00> : vector<11x11xf32>
    %102 = tpu.matmul %97, %99, %cst_39 {dimension_numbers = #tpu.dot_dimension_numbers<[1], [1], [0], [0], [0, 0, 1, 0], [], []>} : vector<11x32xbf16>, vector<11x32xbf16>, vector<11x11xf32> -> vector<11x11xf32>
    %cst_40 = arith.constant 0.176776692 : f32
    %103 = vector.broadcast %cst_40 : f32 to vector<11x11xf32>
    %104 = arith.mulf %102, %103 : vector<11x11xf32>
    %105 = vector.broadcast %26 : vector<1x11xf32> to vector<11x11xf32>
    %106 = arith.addf %104, %105 : vector<11x11xf32>
    %cst_41 = arith.constant dense<0xFF800000> : vector<11xf32>
    %107 = vector.multi_reduction <maximumf>, %106, %cst_41 [1] : vector<11x11xf32> to vector<11xf32>
    %108 = vector.shape_cast %107 : vector<11xf32> to vector<11x1xf32>
    %109 = vector.broadcast %108 : vector<11x1xf32> to vector<11x11xf32>
    %110 = arith.subf %106, %109 : vector<11x11xf32>
    %111 = math.exp %110 : vector<11x11xf32>
    %cst_42 = arith.constant dense<0.000000e+00> : vector<11xf32>
    %112 = vector.multi_reduction <add>, %111, %cst_42 [1] : vector<11x11xf32> to vector<11xf32>
    %113 = vector.shape_cast %112 : vector<11xf32> to vector<11x1xf32>
    %114 = tpu.reciprocal %113 {approx = true} : vector<11x1xf32> -> vector<11x1xf32>
    %115 = vector.broadcast %114 : vector<11x1xf32> to vector<11x11xf32>
    %116 = arith.mulf %111, %115 : vector<11x11xf32>
    %117 = arith.truncf %116 : vector<11x11xf32> to vector<11x11xbf16>
    %cst_43 = arith.constant dense<0.000000e+00> : vector<11x32xf32>
    %118 = tpu.matmul %117, %101, %cst_43 {dimension_numbers = #tpu.dot_dimension_numbers<[1], [0], [0], [1], [0, 0, 1, 1], [], []>} : vector<11x11xbf16>, vector<11x32xbf16>, vector<11x32xf32> -> vector<11x32xf32>
    %119 = tpu.concatenate %49, %72, %95, %118 in 1 : vector<11x32xf32>, vector<11x32xf32>, vector<11x32xf32>, vector<11x32xf32> -> vector<11x128xf32>
    %120 = arith.truncf %119 : vector<11x128xf32> to vector<11x128xbf16>
    %c0_44 = arith.constant 0 : index
    %c0_45 = arith.constant 0 : index
    %121 = vector.load %arg10[%c0_44, %c0_45] : memref<128x128xbf16, #tpu.memory_space<vmem>>, vector<128x128xbf16>
    %cst_46 = arith.constant dense<0.000000e+00> : vector<11x128xf32>
    %122 = tpu.matmul %120, %121, %cst_46 {dimension_numbers = #tpu.dot_dimension_numbers<[1], [0], [0], [1], [0, 0, 1, 1], [], []>} : vector<11x128xbf16>, vector<128x128xbf16>, vector<11x128xf32> -> vector<11x128xf32>
    %c0_47 = arith.constant 0 : index
    %c0_48 = arith.constant 0 : index
    %123 = vector.load %arg11[%c0_47, %c0_48] : memref<1x128xf32, #tpu.memory_space<vmem>>, vector<1x128xf32>
    %124 = vector.broadcast %123 : vector<1x128xf32> to vector<11x128xf32>
    %125 = arith.addf %122, %124 : vector<11x128xf32>
    %126 = arith.addf %1, %125 : vector<11x128xf32>
    %c0_49 = arith.constant 0 : index
    %c0_50 = arith.constant 0 : index
    %c0_51 = arith.constant 0 : index
    %127 = vector.load %arg12[%c0_49, %c0_50, %c0_51] : memref<1x11x128xf32, #tpu.memory_space<vmem>>, vector<1x11x128xf32>
    %128 = vector.shape_cast %127 : vector<1x11x128xf32> to vector<11x128xf32>
    %129 = vector.shape_cast %126 : vector<11x128xf32> to vector<1x11x128xf32>
    tpu.vector_store %arg12[%c0_49, %c0_50, %c0_51], %129 {strides = array<i32>} : memref<1x11x128xf32, #tpu.memory_space<vmem>>, vector<1x11x128xf32>,
    return
  }
  func.func @transform_0(%arg0: i32) -> (i32, i32, i32) {
    %c0_i32 = arith.constant 0 : i32
    %c0_i32_0 = arith.constant 0 : i32
    %c0_i32_1 = arith.constant 0 : i32
    return %arg0, %c0_i32, %c0_i32_0 : i32, i32, i32
  }
  func.func @transform_1(%arg0: i32) -> (i32, i32, i32) {
    %c0_i32 = arith.constant 0 : i32
    %c0_i32_0 = arith.constant 0 : i32
    %c0_i32_1 = arith.constant 0 : i32
    return %arg0, %c0_i32, %c0_i32_0 : i32, i32, i32
  }
  func.func @transform_2(%arg0: i32) -> (i32, i32, i32) {
    %c0_i32 = arith.constant 0 : i32
    %c0_i32_0 = arith.constant 0 : i32
    %c0_i32_1 = arith.constant 0 : i32
    return %arg0, %c0_i32, %c0_i32_0 : i32, i32, i32
  }
  func.func @transform_3(%arg0: i32) -> (i32, i32) {
    %c0_i32 = arith.constant 0 : i32
    %c0_i32_0 = arith.constant 0 : i32
    %c0_i32_1 = arith.constant 0 : i32
    return %c0_i32, %c0_i32_0 : i32, i32
  }
  func.func @transform_4(%arg0: i32) -> (i32, i32) {
    %c0_i32 = arith.constant 0 : i32
    %c0_i32_0 = arith.constant 0 : i32
    %c0_i32_1 = arith.constant 0 : i32
    return %c0_i32, %c0_i32_0 : i32, i32
  }
  func.func @transform_5(%arg0: i32) -> (i32, i32) {
    %c0_i32 = arith.constant 0 : i32
    %c0_i32_0 = arith.constant 0 : i32
    %c0_i32_1 = arith.constant 0 : i32
    return %c0_i32, %c0_i32_0 : i32, i32
  }
  func.func @transform_6(%arg0: i32) -> (i32, i32) {
    %c0_i32 = arith.constant 0 : i32
    %c0_i32_0 = arith.constant 0 : i32
    %c0_i32_1 = arith.constant 0 : i32
    return %c0_i32, %c0_i32_0 : i32, i32
  }
  func.func @transform_7(%arg0: i32) -> (i32, i32) {
    %c0_i32 = arith.constant 0 : i32
    %c0_i32_0 = arith.constant 0 : i32
    %c0_i32_1 = arith.constant 0 : i32
    return %c0_i32, %c0_i32_0 : i32, i32
  }
  func.func @transform_8(%arg0: i32) -> (i32, i32) {
    %c0_i32 = arith.constant 0 : i32
    %c0_i32_0 = arith.constant 0 : i32
    %c0_i32_1 = arith.constant 0 : i32
    return %c0_i32, %c0_i32_0 : i32, i32
  }
  func.func @transform_9(%arg0: i32) -> (i32, i32) {
    %c0_i32 = arith.constant 0 : i32
    %c0_i32_0 = arith.constant 0 : i32
    %c0_i32_1 = arith.constant 0 : i32
    return %c0_i32, %c0_i32_0 : i32, i32
  }
  func.func @transform_10(%arg0: i32) -> (i32, i32) {
    %c0_i32 = arith.constant 0 : i32
    %c0_i32_0 = arith.constant 0 : i32
    %c0_i32_1 = arith.constant 0 : i32
    return %c0_i32, %c0_i32_0 : i32, i32
  }
  func.func @transform_11(%arg0: i32) -> (i32, i32, i32) {
    %c0_i32 = arith.constant 0 : i32
    %c0_i32_0 = arith.constant 0 : i32
    %c0_i32_1 = arith.constant 0 : i32
    return %arg0, %c0_i32, %c0_i32_0 : i32, i32, i32
  }
}

</mosaic_0001>

<llo_original>
// kernel: tpu_custom_call.1
$region0: #{tpu_custom_call.1}
  #allocation0 [shape = 'u32[]', space=smem, size = 0x4, offset = 0x4, fixed_abs, tag = 'smem constant byte address 0x4 - core index']
  #allocation1 [shape = 'u32[144,128]{1,0:T(1,128)}', space=vmem, size = 0x12000, scoped, tag = 'internal scratch']
  %s0 = inlined_call_operand.vmem [shape: f32[2,11,128], index: 0, kind: input, shape index: {}]
  %s1 = inlined_call_operand.vmem [shape: f32[2,11,128], index: 1, kind: input, shape index: {}]
  %s2 = inlined_call_operand.vmem [shape: f32[2,1,11], index: 2, kind: input, shape index: {}]
  %s3 = inlined_call_operand.vmem [shape: bf16[128,128], index: 3, kind: input, shape index: {}]
  %s4 = inlined_call_operand.vmem [shape: f32[1,128], index: 4, kind: input, shape index: {}]
  %s5 = inlined_call_operand.hbm [shape: bf16[128,128], index: 5, kind: input, shape index: {}]
  %s6 = inlined_call_operand.vmem [shape: f32[1,128], index: 6, kind: input, shape index: {}]
  %s7 = inlined_call_operand.hbm [shape: bf16[128,128], index: 7, kind: input, shape index: {}]
  %s8 = inlined_call_operand.vmem [shape: f32[1,128], index: 8, kind: input, shape index: {}]
  %s9 = inlined_call_operand.hbm [shape: bf16[128,128], index: 9, kind: input, shape index: {}]
  %s10 = inlined_call_operand.vmem [shape: f32[1,128], index: 10, kind: input, shape index: {}]
  %s11 = inlined_call_operand.vmem [shape: f32[2,11,128], index: 11, kind: output, shape index: {}]
  %s12 = sld [smem:[#allocation0]]
  $region89: #{tpu_custom_call.1} parent=0
    _
  %s14 = ssub.s32 1, %s12
  %s15 = scalar_select 0, %s14, %s12
  $region1: #{tpu_custom_call.1} parent=0
    #allocation2 [shape = 'u8[32768]{0}', space=vmem, size = 0x8000, scoped, tag = 'input window, operand 5, single buffered']
    #allocation3 [shape = 's32[2]{0}', space=sflag, size = 0x8, scoped, tag = 'scoped memory for tpu_custom_call.1']
    #allocation4 [shape = 'u8[32768]{0}', space=vmem, size = 0x8000, scoped, tag = 'input window, operand 7, single buffered']
    #allocation5 [shape = 's32[1]{0}', space=sflag, size = 0x4, scoped, tag = 'scoped memory for tpu_custom_call.1']
    #allocation6 [shape = 'u8[32768]{0}', space=vmem, size = 0x8000, scoped, tag = 'input window, operand 9, single buffered']
    %16 = vsyncpa [#allocation3], 0
    %17 = vsyncpa [#allocation5], 0
    loop: start=0, step=1, limit=4
    $region2: #{tpu_custom_call.1} parent=1 // loop_pre_header
      _
    $region3: #{tpu_custom_call.1} parent=1 // loop_header
      %s19 = sphi 0, %s23
      %p20 = scmp.ge.s32.totalorder %s19, 4
      %s29 = sphi 0, %s31
      %s32 = sphi 0, %s29
      %s33 = sphi 0, %s32
      %s49 = sphi 0, %s33
      %s55 = sphi 0, %s57
      %s58 = sphi 0, %s55
      %s59 = sphi 0, %s58
      %s75 = sphi 0, %s59
      %s81 = sphi 0, %s83
      %s84 = sphi 0, %s81
      %s85 = sphi 0, %s84
      %s101 = sphi 0, %s85
      %s105 = sphi 0, %s105
      %s107 = sphi 0, %s105
      %s108 = sphi 0, %s107
      %s122 = sphi 0, %s108
      %s126 = sphi 0, %s126
      %s128 = sphi 0, %s126
      %s129 = sphi 0, %s128
      %s143 = sphi 0, %s129
      %s147 = sphi 0, %s147
      %s149 = sphi 0, %s147
      %s150 = sphi 0, %s149
      %s164 = sphi 0, %s150
      %s168 = sphi 0, %s168
      %s170 = sphi 0, %s168
      %s171 = sphi 0, %s170
      %s185 = sphi 0, %s171
      %s189 = sphi 0, %s189
      %s191 = sphi 0, %s189
      %s192 = sphi 0, %s191
      %s206 = sphi 0, %s192
      %s210 = sphi 0, %s210
      %s212 = sphi 0, %s210
      %s213 = sphi 0, %s212
      %s227 = sphi 0, %s213
      %s231 = sphi 0, %s231
      %s233 = sphi 0, %s231
      %s234 = sphi 0, %s233
      %s248 = sphi 0, %s234
      %s252 = sphi 0, %s252
      %s254 = sphi 0, %s252
      %s255 = sphi 0, %s254
      %s269 = sphi 0, %s255
      %s275 = sphi 0, %s277
      %s278 = sphi 0, %s275
      %s279 = sphi 0, %s278
      %s295 = sphi 0, %s279
    $region4: #{tpu_custom_call.1} parent=1 // loop_header_branch
      %22 = sbr.rel (%p20) target = $region8
    $region5: #{tpu_custom_call.1} parent=1 // loop_body
      %s24 = ssub.s32 %s19, 1
      %s25 = ssub.s32 %s19, 2
      %s26 = sadd.s32 %s19, 1
      %s27 = ssub.s32 %s19, %s26
      %p28 = scmp.eq.s32.totalorder %s27, 0
      %s30 = sadd.s32 %s29, 1
      %s31 = scalar_select %p28, %s29, %s30
      %p34 = pneg %p28
      %p35 = scmp.eq.s32.totalorder %s19, 1
      %p36 = por %p34, %p35
      %p37 = scmp.ne.s32.totalorder %s29, %s32
      %p38 = scmp.eq.s32.totalorder %s19, 0
      %p39 = por %p37, %p38
      %p40 = scmp.ne.s32.totalorder %s29, %s32
      %p41 = scmp.eq.s32.totalorder %s24, 1
      %p42 = por %p40, %p41
      %p43 = scmp.ne.s32.totalorder %s32, %s33
      %p44 = scmp.eq.s32.totalorder %s24, 0
      %p45 = por %p43, %p44
      %p46 = scmp.ne.s32.totalorder %s32, %s33
      %p47 = scmp.eq.s32.totalorder %s25, 1
      %p48 = por %p46, %p47
      %p50 = scmp.ne.s32.totalorder %s33, %s49
      %p51 = scmp.eq.s32.totalorder %s25, 0
      %p52 = por %p50, %p51
      %s53 = ssub.s32 %s19, %s26
      %p54 = scmp.eq.s32.totalorder %s53, 0
      %s56 = sadd.s32 %s55, 1
      %s57 = scalar_select %p54, %s55, %s56
      %p60 = pneg %p54
      %p61 = scmp.eq.s32.totalorder %s19, 1
      %p62 = por %p60, %p61
      %p63 = scmp.ne.s32.totalorder %s55, %s58
      %p64 = scmp.eq.s32.totalorder %s19, 0
      %p65 = por %p63, %p64
      %p66 = scmp.ne.s32.totalorder %s55, %s58
      %p67 = scmp.eq.s32.totalorder %s24, 1
      %p68 = por %p66, %p67
      %p69 = scmp.ne.s32.totalorder %s58, %s59
      %p70 = scmp.eq.s32.totalorder %s24, 0
      %p71 = por %p69, %p70
      %p72 = scmp.ne.s32.totalorder %s58, %s59
      %p73 = scmp.eq.s32.totalorder %s25, 1
      %p74 = por %p72, %p73
      %p76 = scmp.ne.s32.totalorder %s59, %s75
      %p77 = scmp.eq.s32.totalorder %s25, 0
      %p78 = por %p76, %p77
      %s79 = ssub.s32 %s19, %s26
      %p80 = scmp.eq.s32.totalorder %s79, 0
      %s82 = sadd.s32 %s81, 1
      %s83 = scalar_select %p80, %s81, %s82
      %p86 = pneg %p80
      %p87 = scmp.eq.s32.totalorder %s19, 1
      %p88 = por %p86, %p87
      %p89 = scmp.ne.s32.totalorder %s81, %s84
      %p90 = scmp.eq.s32.totalorder %s19, 0
      %p91 = por %p89, %p90
      %p92 = scmp.ne.s32.totalorder %s81, %s84
      %p93 = scmp.eq.s32.totalorder %s24, 1
      %p94 = por %p92, %p93
      %p95 = scmp.ne.s32.totalorder %s84, %s85
      %p96 = scmp.eq.s32.totalorder %s24, 0
      %p97 = por %p95, %p96
      %p98 = scmp.ne.s32.totalorder %s84, %s85
      %p99 = scmp.eq.s32.totalorder %s25, 1
      %p100 = por %p98, %p99
      %p102 = scmp.ne.s32.totalorder %s85, %s101
      %p103 = scmp.eq.s32.totalorder %s25, 0
      %p104 = por %p102, %p103
      %s106 = sadd.s32 %s105, 1
      %p109 = scmp.eq.s32.totalorder %s19, 1
      %p110 = scmp.ne.s32.totalorder %s105, %s107
      %p111 = scmp.eq.s32.totalorder %s19, 0
      %p112 = por %p110, %p111
      %p113 = scmp.ne.s32.totalorder %s105, %s107
      %p114 = scmp.eq.s32.totalorder %s24, 1
      %p115 = por %p113, %p114
      %p116 = scmp.ne.s32.totalorder %s107, %s108
      %p117 = scmp.eq.s32.totalorder %s24, 0
      %p118 = por %p116, %p117
      %p119 = scmp.ne.s32.totalorder %s107, %s108
      %p120 = scmp.eq.s32.totalorder %s25, 1
      %p121 = por %p119, %p120
      %p123 = scmp.ne.s32.totalorder %s108, %s122
      %p124 = scmp.eq.s32.totalorder %s25, 0
      %p125 = por %p123, %p124
      %s127 = sadd.s32 %s126, 1
      %p130 = scmp.eq.s32.totalorder %s19, 1
      %p131 = scmp.ne.s32.totalorder %s126, %s128
      %p132 = scmp.eq.s32.totalorder %s19, 0
      %p133 = por %p131, %p132
      %p134 = scmp.ne.s32.totalorder %s126, %s128
      %p135 = scmp.eq.s32.totalorder %s24, 1
      %p136 = por %p134, %p135
      %p137 = scmp.ne.s32.totalorder %s128, %s129
      %p138 = scmp.eq.s32.totalorder %s24, 0
      %p139 = por %p137, %p138
      %p140 = scmp.ne.s32.totalorder %s128, %s129
      %p141 = scmp.eq.s32.totalorder %s25, 1
      %p142 = por %p140, %p141
      %p144 = scmp.ne.s32.totalorder %s129, %s143
      %p145 = scmp.eq.s32.totalorder %s25, 0
      %p146 = por %p144, %p145
      %s148 = sadd.s32 %s147, 1
      %p151 = scmp.eq.s32.totalorder %s19, 1
      %p152 = scmp.ne.s32.totalorder %s147, %s149
      %p153 = scmp.eq.s32.totalorder %s19, 0
      %p154 = por %p152, %p153
      %p155 = scmp.ne.s32.totalorder %s147, %s149
      %p156 = scmp.eq.s32.totalorder %s24, 1
      %p157 = por %p155, %p156
      %p158 = scmp.ne.s32.totalorder %s149, %s150
      %p159 = scmp.eq.s32.totalorder %s24, 0
      %p160 = por %p158, %p159
      %p161 = scmp.ne.s32.totalorder %s149, %s150
      %p162 = scmp.eq.s32.totalorder %s25, 1
      %p163 = por %p161, %p162
      %p165 = scmp.ne.s32.totalorder %s150, %s164
      %p166 = scmp.eq.s32.totalorder %s25, 0
      %p167 = por %p165, %p166
      %s169 = sadd.s32 %s168, 1
      %p172 = scmp.eq.s32.totalorder %s19, 1
      %p173 = scmp.ne.s32.totalorder %s168, %s170
      %p174 = scmp.eq.s32.totalorder %s19, 0
      %p175 = por %p173, %p174
      %p176 = scmp.ne.s32.totalorder %s168, %s170
      %p177 = scmp.eq.s32.totalorder %s24, 1
      %p178 = por %p176, %p177
      %p179 = scmp.ne.s32.totalorder %s170, %s171
      %p180 = scmp.eq.s32.totalorder %s24, 0
      %p181 = por %p179, %p180
      %p182 = scmp.ne.s32.totalorder %s170, %s171
      %p183 = scmp.eq.s32.totalorder %s25, 1
      %p184 = por %p182, %p183
      %p186 = scmp.ne.s32.totalorder %s171, %s185
      %p187 = scmp.eq.s32.totalorder %s25, 0
      %p188 = por %p186, %p187
      %s190 = sadd.s32 %s189, 1
      %p193 = scmp.eq.s32.totalorder %s19, 1
      %p194 = scmp.ne.s32.totalorder %s189, %s191
      %p195 = scmp.eq.s32.totalorder %s19, 0
      %p196 = por %p194, %p195
      %p197 = scmp.ne.s32.totalorder %s189, %s191
      %p198 = scmp.eq.s32.totalorder %s24, 1
      %p199 = por %p197, %p198
      %p200 = scmp.ne.s32.totalorder %s191, %s192
      %p201 = scmp.eq.s32.totalorder %s24, 0
      %p202 = por %p200, %p201
      %p203 = scmp.ne.s32.totalorder %s191, %s192
      %p204 = scmp.eq.s32.totalorder %s25, 1
      %p205 = por %p203, %p204
      %p207 = scmp.ne.s32.totalorder %s192, %s206
      %p208 = scmp.eq.s32.totalorder %s25, 0
      %p209 = por %p207, %p208
      %s211 = sadd.s32 %s210, 1
      %p214 = scmp.eq.s32.totalorder %s19, 1
      %p215 = scmp.ne.s32.totalorder %s210, %s212
      %p216 = scmp.eq.s32.totalorder %s19, 0
      %p217 = por %p215, %p216
      %p218 = scmp.ne.s32.totalorder %s210, %s212
      %p219 = scmp.eq.s32.totalorder %s24, 1
      %p220 = por %p218, %p219
      %p221 = scmp.ne.s32.totalorder %s212, %s213
      %p222 = scmp.eq.s32.totalorder %s24, 0
      %p223 = por %p221, %p222
      %p224 = scmp.ne.s32.totalorder %s212, %s213
      %p225 = scmp.eq.s32.totalorder %s25, 1
      %p226 = por %p224, %p225
      %p228 = scmp.ne.s32.totalorder %s213, %s227
      %p229 = scmp.eq.s32.totalorder %s25, 0
      %p230 = por %p228, %p229
      %s232 = sadd.s32 %s231, 1
      %p235 = scmp.eq.s32.totalorder %s19, 1
      %p236 = scmp.ne.s32.totalorder %s231, %s233
      %p237 = scmp.eq.s32.totalorder %s19, 0
      %p238 = por %p236, %p237
      %p239 = scmp.ne.s32.totalorder %s231, %s233
      %p240 = scmp.eq.s32.totalorder %s24, 1
      %p241 = por %p239, %p240
      %p242 = scmp.ne.s32.totalorder %s233, %s234
      %p243 = scmp.eq.s32.totalorder %s24, 0
      %p244 = por %p242, %p243
      %p245 = scmp.ne.s32.totalorder %s233, %s234
      %p246 = scmp.eq.s32.totalorder %s25, 1
      %p247 = por %p245, %p246
      %p249 = scmp.ne.s32.totalorder %s234, %s248
      %p250 = scmp.eq.s32.totalorder %s25, 0
      %p251 = por %p249, %p250
      %s253 = sadd.s32 %s252, 1
      %p256 = scmp.eq.s32.totalorder %s19, 1
      %p257 = scmp.ne.s32.totalorder %s252, %s254
      %p258 = scmp.eq.s32.totalorder %s19, 0
      %p259 = por %p257, %p258
      %p260 = scmp.ne.s32.totalorder %s252, %s254
      %p261 = scmp.eq.s32.totalorder %s24, 1
      %p262 = por %p260, %p261
      %p263 = scmp.ne.s32.totalorder %s254, %s255
      %p264 = scmp.eq.s32.totalorder %s24, 0
      %p265 = por %p263, %p264
      %p266 = scmp.ne.s32.totalorder %s254, %s255
      %p267 = scmp.eq.s32.totalorder %s25, 1
      %p268 = por %p266, %p267
      %p270 = scmp.ne.s32.totalorder %s255, %s269
      %p271 = scmp.eq.s32.totalorder %s25, 0
      %p272 = por %p270, %p271
      %s273 = ssub.s32 %s19, %s26
      %p274 = scmp.eq.s32.totalorder %s273, 0
      %s276 = sadd.s32 %s275, 1
      %s277 = scalar_select %p274, %s275, %s276
      %p280 = pneg %p274
      %p281 = scmp.eq.s32.totalorder %s19, 1
      %p282 = por %p280, %p281
      %p283 = scmp.ne.s32.totalorder %s275, %s278
      %p284 = scmp.eq.s32.totalorder %s19, 0
      %p285 = por %p283, %p284
      %p286 = scmp.ne.s32.totalorder %s275, %s278
      %p287 = scmp.eq.s32.totalorder %s24, 1
      %p288 = por %p286, %p287
      %p289 = scmp.ne.s32.totalorder %s278, %s279
      %p290 = scmp.eq.s32.totalorder %s24, 0
      %p291 = por %p289, %p290
      %p292 = scmp.ne.s32.totalorder %s278, %s279
      %p293 = scmp.eq.s32.totalorder %s25, 1
      %p294 = por %p292, %p293
      %p296 = scmp.ne.s32.totalorder %s279, %s295
      %p297 = scmp.eq.s32.totalorder %s25, 0
      %p298 = por %p296, %p297
      %p299 = scmp.le.s32.totalorder 1, %s19
      %p300 = scmp.lt.s32.totalorder %s19, 3
      %p301 = pnand %p299, %p300
      %p302 = pneg %p301
      // Predicated region
      $region9: #{tpu_custom_call.1} parent=5 // pred_check
        _
      $region10: #{tpu_custom_call.1} parent=5 // pred_check_branch
        %304 = sbr.rel (%p301) target = $region12
      $region11: #{tpu_custom_call.1} parent=5 // pred_region
        %s305 = ssub.s32 %s19, 1
        // Predicated region
        $region13: #{tpu_custom_call.1} parent=11 // pred_check
          %p306 = pneg %p118
        $region14: #{tpu_custom_call.1} parent=11 // pred_check_branch
          %308 = sbr.rel (%p306) target = $region16
        $region15: #{tpu_custom_call.1} parent=11 // pred_region
          _
        $region16: #{tpu_custom_call.1} parent=11 // pred_fallthru
          _
        // Predicated region
        $region17: #{tpu_custom_call.1} parent=11 // pred_check
          %p309 = pneg %p139
        $region18: #{tpu_custom_call.1} parent=11 // pred_check_branch
          %311 = sbr.rel (%p309) target = $region20
        $region19: #{tpu_custom_call.1} parent=11 // pred_region
          _
        $region20: #{tpu_custom_call.1} parent=11 // pred_fallthru
          _
        // Predicated region
        $region21: #{tpu_custom_call.1} parent=11 // pred_check
          %p312 = pneg %p160
        $region22: #{tpu_custom_call.1} parent=11 // pred_check_branch
          %314 = sbr.rel (%p312) target = $region24
        $region23: #{tpu_custom_call.1} parent=11 // pred_region
          %s316 = ssub.s32 1024, 1024
          %317 = vsyncadd [#allocation3], %s316
          %s318 = sshll.u32 [#allocation2], 4
          %s319 = int_to_ptr.vmem [resolvable:$true] %s318
          %324 = dma.hbm_to_vmem [thread:$0]  %s5, 1024, %s319, [#allocation3], 64, 64, 4
        $region24: #{tpu_custom_call.1} parent=11 // pred_fallthru
          _
        // Predicated region
        $region25: #{tpu_custom_call.1} parent=11 // pred_check
          %p325 = pneg %p181
        $region26: #{tpu_custom_call.1} parent=11 // pred_check_branch
          %327 = sbr.rel (%p325) target = $region28
        $region27: #{tpu_custom_call.1} parent=11 // pred_region
          _
        $region28: #{tpu_custom_call.1} parent=11 // pred_fallthru
          _
        // Predicated region
        $region29: #{tpu_custom_call.1} parent=11 // pred_check
          %p328 = pneg %p202
        $region30: #{tpu_custom_call.1} parent=11 // pred_check_branch
          %330 = sbr.rel (%p328) target = $region32
        $region31: #{tpu_custom_call.1} parent=11 // pred_region
          %s332 = ssub.s32 1024, 1024
          %333 = vsyncadd [#allocation5], %s332
          %s334 = sshll.u32 [#allocation4], 4
          %s335 = int_to_ptr.vmem [resolvable:$true] %s334
          %340 = dma.hbm_to_vmem [thread:$0]  %s7, 1024, %s335, [#allocation5], 64, 64, 4
        $region32: #{tpu_custom_call.1} parent=11 // pred_fallthru
          _
        // Predicated region
        $region33: #{tpu_custom_call.1} parent=11 // pred_check
          %p341 = pneg %p223
        $region34: #{tpu_custom_call.1} parent=11 // pred_check_branch
          %343 = sbr.rel (%p341) target = $region36
        $region35: #{tpu_custom_call.1} parent=11 // pred_region
          _
        $region36: #{tpu_custom_call.1} parent=11 // pred_fallthru
          _
        // Predicated region
        $region37: #{tpu_custom_call.1} parent=11 // pred_check
          %p344 = pneg %p244
        $region38: #{tpu_custom_call.1} parent=11 // pred_check_branch
          %346 = sbr.rel (%p344) target = $region40
        $region39: #{tpu_custom_call.1} parent=11 // pred_region
          %s348 = ssub.s32 1024, 1024
          %349 = vsyncadd [#allocation5], %s348
          %s350 = sshll.u32 [#allocation6], 4
          %s351 = int_to_ptr.vmem [resolvable:$true] %s350
          %356 = dma.hbm_to_vmem [thread:$0]  %s9, 1024, %s351, [#allocation5], 64, 64, 4
        $region40: #{tpu_custom_call.1} parent=11 // pred_fallthru
          _
        // Predicated region
        $region41: #{tpu_custom_call.1} parent=11 // pred_check
          %p357 = pneg %p265
        $region42: #{tpu_custom_call.1} parent=11 // pred_check_branch
          %359 = sbr.rel (%p357) target = $region44
        $region43: #{tpu_custom_call.1} parent=11 // pred_region
          _
        $region44: #{tpu_custom_call.1} parent=11 // pred_fallthru
          _
      $region12: #{tpu_custom_call.1} parent=5 // pred_fallthru
        _
      %p360 = scmp.lt.s32.totalorder %s19, 2
      // Predicated region
      $region45: #{tpu_custom_call.1} parent=5 // pred_check
        %p361 = pneg %p360
      $region46: #{tpu_custom_call.1} parent=5 // pred_check_branch
        %363 = sbr.rel (%p361) target = $region48
      $region47: #{tpu_custom_call.1} parent=5 // pred_region
        // Predicated region
        $region49: #{tpu_custom_call.1} parent=47 // pred_check
          %p364 = pneg %p39
        $region50: #{tpu_custom_call.1} parent=47 // pred_check_branch
          %366 = sbr.rel (%p364) target = $region52
        $region51: #{tpu_custom_call.1} parent=47 // pred_region
          %p367 = scmp.lt.s32.totalorder %s19, 1
          %s368 = scalar_select %p367, %s19, 1
          %s369 = smul.addr %s368, 2
          %s370 = smul.addr %s369, 8
          %s371 = scalar_lea.vmem %s0, %s370
        $region52: #{tpu_custom_call.1} parent=47 // pred_fallthru
          _
        // Predicated region
        $region53: #{tpu_custom_call.1} parent=47 // pred_check
          %p372 = pneg %p65
        $region54: #{tpu_custom_call.1} parent=47 // pred_check_branch
          %374 = sbr.rel (%p372) target = $region56
        $region55: #{tpu_custom_call.1} parent=47 // pred_region
          %p375 = scmp.lt.s32.totalorder %s19, 1
          %s376 = scalar_select %p375, %s19, 1
          %s377 = smul.addr %s376, 2
          %s378 = smul.addr %s377, 8
          %s379 = scalar_lea.vmem %s1, %s378
        $region56: #{tpu_custom_call.1} parent=47 // pred_fallthru
          _
        // Predicated region
        $region57: #{tpu_custom_call.1} parent=47 // pred_check
          %p380 = pneg %p91
        $region58: #{tpu_custom_call.1} parent=47 // pred_check_branch
          %382 = sbr.rel (%p380) target = $region60
        $region59: #{tpu_custom_call.1} parent=47 // pred_region
          %p383 = scmp.lt.s32.totalorder %s19, 1
          %s384 = scalar_select %p383, %s19, 1
          %s385 = scalar_lea.vmem %s2, %s384
        $region60: #{tpu_custom_call.1} parent=47 // pred_fallthru
          _
      $region48: #{tpu_custom_call.1} parent=5 // pred_fallthru
        _
      %p386 = scmp.le.s32.totalorder 1, %s19
      %p387 = scmp.lt.s32.totalorder %s19, 3
      %p388 = pnand %p386, %p387
      %p389 = pneg %p388
      // Predicated region
      $region61: #{tpu_custom_call.1} parent=5 // pred_check
        _
      $region62: #{tpu_custom_call.1} parent=5 // pred_check_branch
        %391 = sbr.rel (%p388) target = $region64
      $region63: #{tpu_custom_call.1} parent=5 // pred_region
        %s392 = ssub.s32 %s19, 1
        // Predicated region
        $region65: #{tpu_custom_call.1} parent=63 // pred_check
          %p393 = pneg %p160
        $region66: #{tpu_custom_call.1} parent=63 // pred_check_branch
          %395 = sbr.rel (%p393) target = $region68
        $region67: #{tpu_custom_call.1} parent=63 // pred_region
          %396 = dma.done [#allocation3], 1024
        $region68: #{tpu_custom_call.1} parent=63 // pred_fallthru
          _
        // Predicated region
        $region69: #{tpu_custom_call.1} parent=63 // pred_check
          %p397 = pneg %p202
        $region70: #{tpu_custom_call.1} parent=63 // pred_check_branch
          %399 = sbr.rel (%p397) target = $region72
        $region71: #{tpu_custom_call.1} parent=63 // pred_region
          %400 = dma.done [#allocation5], 1024
        $region72: #{tpu_custom_call.1} parent=63 // pred_fallthru
          _
        // Predicated region
        $region73: #{tpu_custom_call.1} parent=63 // pred_check
          %p401 = pneg %p244
        $region74: #{tpu_custom_call.1} parent=63 // pred_check_branch
          %403 = sbr.rel (%p401) target = $region76
        $region75: #{tpu_custom_call.1} parent=63 // pred_region
          %404 = dma.done [#allocation5], 1024
        $region76: #{tpu_custom_call.1} parent=63 // pred_fallthru
          _
        %p405 = scmp.lt.s32.totalorder %s24, 1
        %s406 = scalar_select %p405, %s24, 1
        %s407 = smul.addr %s406, 2
        %s408 = smul.addr %s407, 8
        %s409 = scalar_lea.vmem %s0, %s408
        %p410 = pneg %p45
        %p411 = pneg %p42
        %p412 = scmp.lt.s32.totalorder %s24, 1
        %s413 = scalar_select %p412, %s24, 1
        %s414 = smul.addr %s413, 2
        %s415 = smul.addr %s414, 8
        %s416 = scalar_lea.vmem %s1, %s415
        %p417 = pneg %p71
        %p418 = pneg %p68
        %p419 = scmp.lt.s32.totalorder %s24, 1
        %s420 = scalar_select %p419, %s24, 1
        %s421 = scalar_lea.vmem %s2, %s420
        %p422 = pneg %p97
        %p423 = pneg %p94
        %p424 = pneg %p118
        %p425 = pneg %p115
        %p426 = pneg %p139
        %p427 = pneg %p136
        %p428 = pneg %p160
        %p429 = pneg %p157
        %p430 = pneg %p181
        %p431 = pneg %p178
        %p432 = pneg %p202
        %p433 = pneg %p199
        %p434 = pneg %p223
        %p435 = pneg %p220
        %p436 = pneg %p244
        %p437 = pneg %p241
        %p438 = pneg %p265
        %p439 = pneg %p262
        %p440 = pneg %p291
        %p441 = pneg %p288
        %p442 = scmp.lt.s32.totalorder %s24, 1
        %s443 = scalar_select %p442, %s24, 1
        %s444 = smul.addr %s443, 2
        %s445 = smul.addr %s444, 8
        %s446 = scalar_lea.vmem %s11, %s445
        %p447 = scmp.lt.s32.totalorder %s24, 1
        %s448 = scalar_select %p447, %s24, 1
        %s449 = smul.addr %s448, 2
        %s450 = smul.addr %s449, 8
        %s451 = scalar_lea.vmem %s0, %s450
        %p452 = scmp.lt.s32.totalorder %s24, 1
        %s453 = scalar_select %p452, %s24, 1
        %s454 = smul.addr %s453, 2
        %s455 = smul.addr %s454, 8
        %s456 = scalar_lea.vmem %s1, %s455
        %p457 = scmp.lt.s32.totalorder %s24, 1
        %s458 = scalar_select %p457, %s24, 1
        %s459 = scalar_lea.vmem %s2, %s458
        %p460 = scmp.lt.s32.totalorder %s24, 1
        %s461 = scalar_select %p460, %s24, 1
        %s462 = smul.addr %s461, 2
        %s463 = smul.addr %s462, 8
        %s464 = scalar_lea.vmem %s11, %s463
        %v466 = vld [vmem:[%s451] sm:$0xff]
        %v467 = vld [vmem:[%s451 + $0x8] sm:$0x7]
        %v468 = vld [vmem:[%s456] sm:$0xff]
        %v469 = vld [vmem:[%s456 + $0x8] sm:$0x7]
        %v470 = vpack.c.bf16 %v467, %v466
        %v471 = vpack.c.bf16 %v469, %v468
        %v472 = vld [vmem:[%s3] sm:$0xf]
        %v473 = vld [vmem:[%s3 + $0x4] sm:$0xf]
        %v474 = vld [vmem:[%s3 + $0x8] sm:$0xf]
        %v475 = vld [vmem:[%s3 + $0xc] sm:$0xf]
        %v476 = vld [vmem:[%s3 + $0x10] sm:$0xf]
        %v477 = vld [vmem:[%s3 + $0x14] sm:$0xf]
        %v478 = vld [vmem:[%s3 + $0x18] sm:$0xf]
        %v479 = vld [vmem:[%s3 + $0x1c] sm:$0xf]
        %v480 = vld [vmem:[%s3 + $0x20] sm:$0xf]
        %v481 = vld [vmem:[%s3 + $0x24] sm:$0xf]
        %v482 = vld [vmem:[%s3 + $0x28] sm:$0xf]
        %v483 = vld [vmem:[%s3 + $0x2c] sm:$0xf]
        %v484 = vld [vmem:[%s3 + $0x30] sm:$0xf]
        %v485 = vld [vmem:[%s3 + $0x34] sm:$0xf]
        %v486 = vld [vmem:[%s3 + $0x38] sm:$0xf]
        %v487 = vld [vmem:[%s3 + $0x3c] sm:$0xf]
        %v488 = vld [vmem:[%s4] sm:$0x1]
        %v490 = vlaneseq
        %v491 = vshrl.u32 %v490, 7
        %v492 = vsub.s32 0, %v491
        %v493 = vrot.slane %v488, %v492
        %v511 = vunpack.c.l.b16 %v472
        %v512 = vunpack.c.l.b16 %v473
        %v513 = vunpack.c.l.b16 %v474
        %v514 = vunpack.c.l.b16 %v475
        %v515 = vunpack.c.l.b16 %v476
        %v516 = vunpack.c.l.b16 %v477
        %v517 = vunpack.c.l.b16 %v478
        %v518 = vunpack.c.l.b16 %v479
        %v519 = vunpack.c.l.b16 %v480
        %v520 = vunpack.c.l.b16 %v481
        %v521 = vunpack.c.l.b16 %v482
        %v522 = vunpack.c.l.b16 %v483
        %v523 = vunpack.c.l.b16 %v484
        %v524 = vunpack.c.l.b16 %v485
        %v525 = vunpack.c.l.b16 %v486
        %v526 = vunpack.c.l.b16 %v487
        %v527 = vpack.c.b16 %v512, %v511
        %v528 = vpack.c.b16 %v514, %v513
        %v529 = vpack.c.b16 %v516, %v515
        %v530 = vpack.c.b16 %v518, %v517
        %v531 = vpack.c.b16 %v520, %v519
        %v532 = vpack.c.b16 %v522, %v521
        %v533 = vpack.c.b16 %v524, %v523
        %v534 = vpack.c.b16 %v526, %v525
        %543 = vmatprep.subr.bf16.mxu0 0
        %544 = vmatpush1.bf16.msra.mxu0 %v534
        %545 = vmatprep.subr.bf16.mxu0 0
        %546 = vmatpush1.bf16.msra.mxu0 %v533
        %547 = vmatprep.subr.bf16.mxu0 0
        %548 = vmatpush1.bf16.msra.mxu0 %v532
        %549 = vmatprep.subr.bf16.mxu0 0
        %550 = vmatpush1.bf16.msra.mxu0 %v531
        %551 = vmatprep.subr.bf16.mxu0 0
        %552 = vmatpush1.bf16.msra.mxu0 %v530
        %553 = vmatprep.subr.bf16.mxu0 0
        %554 = vmatpush1.bf16.msra.mxu0 %v529
        %555 = vmatprep.subr.bf16.mxu0 0
        %556 = vmatpush1.bf16.msra.mxu0 %v528
        %557 = vmatprep.subr.bf16.mxu0 0
        %558 = vmatpush1.bf16.msra.mxu0 %v527
        %559 = vmatprep.subr.bf16.mxu0 0
        %560 = vmatpush2.bf16.msra.mxu0 0
        %561 = vmatprep.subr.bf16.mxu0 0
        %562 = vmatpush2.bf16.msra.mxu0 0
        %563 = vmatprep.subr.bf16.mxu0 0
        %564 = vmatpush2.bf16.msra.mxu0 0
        %565 = vmatprep.subr.bf16.mxu0 0
        %566 = vmatpush2.bf16.msra.mxu0 0
        %567 = vmatprep.subr.bf16.mxu0 0
        %568 = vmatpush2.bf16.msra.mxu0 0
        %569 = vmatprep.subr.bf16.mxu0 0
        %570 = vmatpush2.bf16.msra.mxu0 0
        %571 = vmatprep.subr.bf16.mxu0 0
        %572 = vmatpush2.bf16.msra.mxu0 0
        %573 = vmatprep.subr.bf16.mxu0 0
        %574 = vmatpush2.bf16.msra.mxu0 0
        %575 = vmatprep.mubr.bf16.mxu0 0
        %576 = vmatmul.mubr.bf16.gmra.mxu0 %v470
        %v577 = vpop.f32.mrf.mxu0
        %v578 = vadd.f32 %v493, %v577
        %v579 = vpop.f32.mrf.mxu0
        %v580 = vpop.f32.mrf.mxu0
        %v581 = vadd.f32 %v493, %v580
        %v582 = vpop.f32.mrf.mxu0
        %583 = vdwg.mxu0
        %v584 = vld [vmem:[#allocation2] sm:$0xf]
        %v585 = vld [vmem:[#allocation2 + $0x4] sm:$0xf]
        %v586 = vld [vmem:[#allocation2 + $0x8] sm:$0xf]
        %v587 = vld [vmem:[#allocation2 + $0xc] sm:$0xf]
        %v588 = vld [vmem:[#allocation2 + $0x10] sm:$0xf]
        %v589 = vld [vmem:[#allocation2 + $0x14] sm:$0xf]
        %v590 = vld [vmem:[#allocation2 + $0x18] sm:$0xf]
        %v591 = vld [vmem:[#allocation2 + $0x1c] sm:$0xf]
        %v592 = vld [vmem:[#allocation2 + $0x20] sm:$0xf]
        %v593 = vld [vmem:[#allocation2 + $0x24] sm:$0xf]
        %v594 = vld [vmem:[#allocation2 + $0x28] sm:$0xf]
        %v595 = vld [vmem:[#allocation2 + $0x2c] sm:$0xf]
        %v596 = vld [vmem:[#allocation2 + $0x30] sm:$0xf]
        %v597 = vld [vmem:[#allocation2 + $0x34] sm:$0xf]
        %v598 = vld [vmem:[#allocation2 + $0x38] sm:$0xf]
        %v599 = vld [vmem:[#allocation2 + $0x3c] sm:$0xf]
        %v600 = vld [vmem:[%s6] sm:$0x1]
        %v602 = vlaneseq
        %v603 = vshrl.u32 %v602, 7
        %v604 = vsub.s32 0, %v603
        %v605 = vrot.slane %v600, %v604
        %v623 = vunpack.c.l.b16 %v584
        %v624 = vunpack.c.l.b16 %v585
        %v625 = vunpack.c.l.b16 %v586
        %v626 = vunpack.c.l.b16 %v587
        %v627 = vunpack.c.l.b16 %v588
        %v628 = vunpack.c.l.b16 %v589
        %v629 = vunpack.c.l.b16 %v590
        %v630 = vunpack.c.l.b16 %v591
        %v631 = vunpack.c.l.b16 %v592
        %v632 = vunpack.c.l.b16 %v593
        %v633 = vunpack.c.l.b16 %v594
        %v634 = vunpack.c.l.b16 %v595
        %v635 = vunpack.c.l.b16 %v596
        %v636 = vunpack.c.l.b16 %v597
        %v637 = vunpack.c.l.b16 %v598
        %v638 = vunpack.c.l.b16 %v599
        %v639 = vpack.c.b16 %v624, %v623
        %v640 = vpack.c.b16 %v626, %v625
        %v641 = vpack.c.b16 %v628, %v627
        %v642 = vpack.c.b16 %v630, %v629
        %v643 = vpack.c.b16 %v632, %v631
        %v644 = vpack.c.b16 %v634, %v633
        %v645 = vpack.c.b16 %v636, %v635
        %v646 = vpack.c.b16 %v638, %v637
        %655 = vmatprep.subr.bf16.mxu0 0
        %656 = vmatpush1.bf16.msra.mxu0 %v646
        %657 = vmatprep.subr.bf16.mxu0 0
        %658 = vmatpush1.bf16.msra.mxu0 %v645
        %659 = vmatprep.subr.bf16.mxu0 0
        %660 = vmatpush1.bf16.msra.mxu0 %v644
        %661 = vmatprep.subr.bf16.mxu0 0
        %662 = vmatpush1.bf16.msra.mxu0 %v643
        %663 = vmatprep.subr.bf16.mxu0 0
        %664 = vmatpush1.bf16.msra.mxu0 %v642
        %665 = vmatprep.subr.bf16.mxu0 0
        %666 = vmatpush1.bf16.msra.mxu0 %v641
        %667 = vmatprep.subr.bf16.mxu0 0
        %668 = vmatpush1.bf16.msra.mxu0 %v640
        %669 = vmatprep.subr.bf16.mxu0 0
        %670 = vmatpush1.bf16.msra.mxu0 %v639
        %671 = vmatprep.subr.bf16.mxu0 0
        %672 = vmatpush2.bf16.msra.mxu0 0
        %673 = vmatprep.subr.bf16.mxu0 0
        %674 = vmatpush2.bf16.msra.mxu0 0
        %675 = vmatprep.subr.bf16.mxu0 0
        %676 = vmatpush2.bf16.msra.mxu0 0
        %677 = vmatprep.subr.bf16.mxu0 0
        %678 = vmatpush2.bf16.msra.mxu0 0
        %679 = vmatprep.subr.bf16.mxu0 0
        %680 = vmatpush2.bf16.msra.mxu0 0
        %681 = vmatprep.subr.bf16.mxu0 0
        %682 = vmatpush2.bf16.msra.mxu0 0
        %683 = vmatprep.subr.bf16.mxu0 0
        %684 = vmatpush2.bf16.msra.mxu0 0
        %685 = vmatprep.subr.bf16.mxu0 0
        %686 = vmatpush2.bf16.msra.mxu0 0
        %687 = vmatprep.mubr.bf16.mxu0 0
        %688 = vmatmul.mubr.bf16.gmra.mxu0 %v471
        %v689 = vpop.f32.mrf.mxu0
        %v690 = vadd.f32 %v605, %v689
        %v691 = vpop.f32.mrf.mxu0
        %v692 = vpop.f32.mrf.mxu0
        %v693 = vadd.f32 %v605, %v692
        %v694 = vpop.f32.mrf.mxu0
        %695 = vdwg.mxu0
        %v696 = vld [vmem:[#allocation4] sm:$0xf]
        %v697 = vld [vmem:[#allocation4 + $0x4] sm:$0xf]
        %v698 = vld [vmem:[#allocation4 + $0x8] sm:$0xf]
        %v699 = vld [vmem:[#allocation4 + $0xc] sm:$0xf]
        %v700 = vld [vmem:[#allocation4 + $0x10] sm:$0xf]
        %v701 = vld [vmem:[#allocation4 + $0x14] sm:$0xf]
        %v702 = vld [vmem:[#allocation4 + $0x18] sm:$0xf]
        %v703 = vld [vmem:[#allocation4 + $0x1c] sm:$0xf]
        %v704 = vld [vmem:[#allocation4 + $0x20] sm:$0xf]
        %v705 = vld [vmem:[#allocation4 + $0x24] sm:$0xf]
        %v706 = vld [vmem:[#allocation4 + $0x28] sm:$0xf]
        %v707 = vld [vmem:[#allocation4 + $0x2c] sm:$0xf]
        %v708 = vld [vmem:[#allocation4 + $0x30] sm:$0xf]
        %v709 = vld [vmem:[#allocation4 + $0x34] sm:$0xf]
        %v710 = vld [vmem:[#allocation4 + $0x38] sm:$0xf]
        %v711 = vld [vmem:[#allocation4 + $0x3c] sm:$0xf]
        %v712 = vld [vmem:[%s8] sm:$0x1]
        %v714 = vlaneseq
        %v715 = vshrl.u32 %v714, 7
        %v716 = vsub.s32 0, %v715
        %v717 = vrot.slane %v712, %v716
        %v735 = vunpack.c.l.b16 %v696
        %v736 = vunpack.c.l.b16 %v697
        %v737 = vunpack.c.l.b16 %v698
        %v738 = vunpack.c.l.b16 %v699
        %v739 = vunpack.c.l.b16 %v700
        %v740 = vunpack.c.l.b16 %v701
        %v741 = vunpack.c.l.b16 %v702
        %v742 = vunpack.c.l.b16 %v703
        %v743 = vunpack.c.l.b16 %v704
        %v744 = vunpack.c.l.b16 %v705
        %v745 = vunpack.c.l.b16 %v706
        %v746 = vunpack.c.l.b16 %v707
        %v747 = vunpack.c.l.b16 %v708
        %v748 = vunpack.c.l.b16 %v709
        %v749 = vunpack.c.l.b16 %v710
        %v750 = vunpack.c.l.b16 %v711
        %v751 = vpack.c.b16 %v736, %v735
        %v752 = vpack.c.b16 %v738, %v737
        %v753 = vpack.c.b16 %v740, %v739
        %v754 = vpack.c.b16 %v742, %v741
        %v755 = vpack.c.b16 %v744, %v743
        %v756 = vpack.c.b16 %v746, %v745
        %v757 = vpack.c.b16 %v748, %v747
        %v758 = vpack.c.b16 %v750, %v749
        %767 = vmatprep.subr.bf16.mxu0 0
        %768 = vmatpush1.bf16.msra.mxu0 %v758
        %769 = vmatprep.subr.bf16.mxu0 0
        %770 = vmatpush1.bf16.msra.mxu0 %v757
        %771 = vmatprep.subr.bf16.mxu0 0
        %772 = vmatpush1.bf16.msra.mxu0 %v756
        %773 = vmatprep.subr.bf16.mxu0 0
        %774 = vmatpush1.bf16.msra.mxu0 %v755
        %775 = vmatprep.subr.bf16.mxu0 0
        %776 = vmatpush1.bf16.msra.mxu0 %v754
        %777 = vmatprep.subr.bf16.mxu0 0
        %778 = vmatpush1.bf16.msra.mxu0 %v753
        %779 = vmatprep.subr.bf16.mxu0 0
        %780 = vmatpush1.bf16.msra.mxu0 %v752
        %781 = vmatprep.subr.bf16.mxu0 0
        %782 = vmatpush1.bf16.msra.mxu0 %v751
        %783 = vmatprep.subr.bf16.mxu0 0
        %784 = vmatpush2.bf16.msra.mxu0 0
        %785 = vmatprep.subr.bf16.mxu0 0
        %786 = vmatpush2.bf16.msra.mxu0 0
        %787 = vmatprep.subr.bf16.mxu0 0
        %788 = vmatpush2.bf16.msra.mxu0 0
        %789 = vmatprep.subr.bf16.mxu0 0
        %790 = vmatpush2.bf16.msra.mxu0 0
        %791 = vmatprep.subr.bf16.mxu0 0
        %792 = vmatpush2.bf16.msra.mxu0 0
        %793 = vmatprep.subr.bf16.mxu0 0
        %794 = vmatpush2.bf16.msra.mxu0 0
        %795 = vmatprep.subr.bf16.mxu0 0
        %796 = vmatpush2.bf16.msra.mxu0 0
        %797 = vmatprep.subr.bf16.mxu0 0
        %798 = vmatpush2.bf16.msra.mxu0 0
        %799 = vmatprep.mubr.bf16.mxu0 0
        %800 = vmatmul.mubr.bf16.gmra.mxu0 %v471
        %v801 = vpop.f32.mrf.mxu0
        %v802 = vadd.f32 %v717, %v801
        %v803 = vpop.f32.mrf.mxu0
        %v804 = vpop.f32.mrf.mxu0
        %v805 = vadd.f32 %v717, %v804
        %v806 = vpop.f32.mrf.mxu0
        %807 = vdwg.mxu0
        %v808 = vld [vmem:[%s459] sm:$0x1]
        %v809 = vsub.f32 1.0, %v808
        %v810 = vmul.f32 %v809, -1e+09
        %v811 = vpack.c.bf16 %v581, %v578
        %v812 = vpack.c.bf16 %v693, %v690
        %v813 = vpack.c.bf16 %v805, %v802
        %vm814 = vcmask 261120
        %v816 = vsel %vm814, %v811, 0
        %v819 = vsel %vm814, %v812, 0
        %821 = vmatprep.subr.bf16.mxu0 0
        %822 = vmatpush1.bf16.xpose.msra.mxu0 0
        %823 = vmatprep.subr.bf16.mxu0 0
        %824 = vmatpush1.bf16.xpose.msra.mxu0 0
        %825 = vmatprep.subr.bf16.mxu0 0
        %826 = vmatpush1.bf16.xpose.msra.mxu0 0
        %827 = vmatprep.subr.bf16.mxu0 0
        %828 = vmatpush1.bf16.xpose.msra.mxu0 0
        %829 = vmatprep.subr.bf16.mxu0 0
        %830 = vmatpush1.bf16.xpose.msra.mxu0 0
        %831 = vmatprep.subr.bf16.mxu0 0
        %832 = vmatpush1.bf16.xpose.msra.mxu0 0
        %833 = vmatprep.subr.bf16.mxu0 0
        %834 = vmatpush1.bf16.xpose.msra.mxu0 0
        %835 = vmatprep.subr.bf16.mxu0 0
        %836 = vmatpush1.bf16.xpose.msra.mxu0 %v819
        %837 = vmatprep.subr.bf16.mxu0 0
        %838 = vmatpush2.bf16.xpose.msra.mxu0 0
        %839 = vmatprep.subr.bf16.mxu0 0
        %840 = vmatpush2.bf16.xpose.msra.mxu0 0
        %841 = vmatprep.subr.bf16.mxu0 0
        %842 = vmatpush2.bf16.xpose.msra.mxu0 0
        %843 = vmatprep.subr.bf16.mxu0 0
        %844 = vmatpush2.bf16.xpose.msra.mxu0 0
        %845 = vmatprep.subr.bf16.mxu0 0
        %846 = vmatpush2.bf16.xpose.msra.mxu0 0
        %847 = vmatprep.subr.bf16.mxu0 0
        %848 = vmatpush2.bf16.xpose.msra.mxu0 0
        %849 = vmatprep.subr.bf16.mxu0 0
        %850 = vmatpush2.bf16.xpose.msra.mxu0 0
        %851 = vmatprep.subr.bf16.mxu0 0
        %852 = vmatpush2.bf16.xpose.msra.mxu0 0
        %853 = vmatprep.mubr.bf16.mxu0 0
        %854 = vmatmul.mubr.bf16.gmra.mxu0 %v816
        %v855 = vpop.f32.mrf.mxu0
        %v856 = vadd.f32 0.0, %v855
        %v857 = vpop.f32.mrf.mxu0
        %v858 = vpop.f32.mrf.mxu0
        %v859 = vadd.f32 0.0, %v858
        %v860 = vpop.f32.mrf.mxu0
        %861 = vdwg.mxu0
        %v862 = vmul.f32 %v856, 0.17677669
        %v863 = vmul.f32 %v859, 0.17677669
        %v865 = vlaneseq
        %v866 = vshrl.u32 %v865, 7
        %v867 = vsub.s32 0, %v866
        %v868 = vrot.slane %v810, %v867
        %v870 = vadd.f32 %v862, %v868
        %v871 = vadd.f32 %v863, %v868
        %vm872 = vcmask 89088
        %v873 = vsel %vm872, %v870, -inf
        %874 = vmax.xlane.f32.xlu0 %v873
        %v875 = vpop.xlane.xlu0 %874
        %vm876 = vcmask 83968
        %v877 = vsel %vm876, %v871, -inf
        %878 = vmax.xlane.f32.xlu0 %v877
        %v879 = vpop.xlane.xlu0 %878
        %v880 = vsub.f32 %v870, %v875
        %v881 = vsub.f32 %v871, %v879
        %v882 = vmul.f32 %v880, 1.442695
        %v883 = vpow.pop %v882
        %v884 = vmul.f32 %v881, 1.442695
        %v885 = vpow.pop %v884
        %v886 = vsel %vm872, %v883, 0.0
        %887 = vadd.xlane.f32.xlu0 %v886
        %v888 = vpop.xlane.xlu0 %887
        %v889 = vsel %vm876, %v885, 0.0
        %890 = vadd.xlane.f32.xlu0 %v889
        %v891 = vpop.xlane.xlu0 %890
        %v892 = vrcp.pop %v888
        %v893 = vrcp.pop %v891
        %v894 = vmul.f32 %v883, %v892
        %v895 = vmul.f32 %v885, %v893
        %v896 = vpack.c.bf16 %v895, %v894
        %v898 = vsel %vm872, %v896, 0
        %vm900 = vcmask 1044480
        %vm901 = vcmask 1045504
        %v902 = vsel %vm900, 4294967295, 65535
        %v903 = vsel %vm901, %v902, 0
        %v905 = vand.u32 %v813, %v903
        %907 = vmatprep.subr.bf16.mxu0 0
        %908 = vmatpush1.bf16.msra.mxu0 0
        %909 = vmatprep.subr.bf16.mxu0 0
        %910 = vmatpush1.bf16.msra.mxu0 0
        %911 = vmatprep.subr.bf16.mxu0 0
        %912 = vmatpush1.bf16.msra.mxu0 0
        %913 = vmatprep.subr.bf16.mxu0 0
        %914 = vmatpush1.bf16.msra.mxu0 0
        %915 = vmatprep.subr.bf16.mxu0 0
        %916 = vmatpush1.bf16.msra.mxu0 0
        %917 = vmatprep.subr.bf16.mxu0 0
        %918 = vmatpush1.bf16.msra.mxu0 0
        %919 = vmatprep.subr.bf16.mxu0 0
        %920 = vmatpush1.bf16.msra.mxu0 0
        %921 = vmatprep.subr.bf16.mxu0 0
        %922 = vmatpush1.bf16.msra.mxu0 %v905
        %923 = vmatprep.subr.bf16.mxu0 0
        %924 = vmatpush2.bf16.msra.mxu0 0
        %925 = vmatprep.subr.bf16.mxu0 0
        %926 = vmatpush2.bf16.msra.mxu0 0
        %927 = vmatprep.subr.bf16.mxu0 0
        %928 = vmatpush2.bf16.msra.mxu0 0
        %929 = vmatprep.subr.bf16.mxu0 0
        %930 = vmatpush2.bf16.msra.mxu0 0
        %931 = vmatprep.subr.bf16.mxu0 0
        %932 = vmatpush2.bf16.msra.mxu0 0
        %933 = vmatprep.subr.bf16.mxu0 0
        %934 = vmatpush2.bf16.msra.mxu0 0
        %935 = vmatprep.subr.bf16.mxu0 0
        %936 = vmatpush2.bf16.msra.mxu0 0
        %937 = vmatprep.subr.bf16.mxu0 0
        %938 = vmatpush2.bf16.msra.mxu0 0
        %939 = vmatprep.mubr.bf16.mxu0 0
        %940 = vmatmul.mubr.bf16.gmra.mxu0 %v898
        %v941 = vpop.f32.mrf.mxu0
        %v942 = vadd.f32 0.0, %v941
        %v943 = vpop.f32.mrf.mxu0
        %v944 = vpop.f32.mrf.mxu0
        %v945 = vadd.f32 0.0, %v944
        %v946 = vpop.f32.mrf.mxu0
        %947 = vdwg.mxu0
        %949 = vrot.lane.b32.xlu0 %v811, 96
        %v950 = vpop.permute.xlu0 %949
        %952 = vrot.lane.b32.xlu0 %v812, 96
        %v953 = vpop.permute.xlu0 %952
        %v955 = vsel %vm814, %v950, 0
        %v958 = vsel %vm814, %v953, 0
        %960 = vmatprep.subr.bf16.mxu0 0
        %961 = vmatpush1.bf16.xpose.msra.mxu0 0
        %962 = vmatprep.subr.bf16.mxu0 0
        %963 = vmatpush1.bf16.xpose.msra.mxu0 0
        %964 = vmatprep.subr.bf16.mxu0 0
        %965 = vmatpush1.bf16.xpose.msra.mxu0 0
        %966 = vmatprep.subr.bf16.mxu0 0
        %967 = vmatpush1.bf16.xpose.msra.mxu0 0
        %968 = vmatprep.subr.bf16.mxu0 0
        %969 = vmatpush1.bf16.xpose.msra.mxu0 0
        %970 = vmatprep.subr.bf16.mxu0 0
        %971 = vmatpush1.bf16.xpose.msra.mxu0 0
        %972 = vmatprep.subr.bf16.mxu0 0
        %973 = vmatpush1.bf16.xpose.msra.mxu0 0
        %974 = vmatprep.subr.bf16.mxu0 0
        %975 = vmatpush1.bf16.xpose.msra.mxu0 %v958
        %976 = vmatprep.subr.bf16.mxu0 0
        %977 = vmatpush2.bf16.xpose.msra.mxu0 0
        %978 = vmatprep.subr.bf16.mxu0 0
        %979 = vmatpush2.bf16.xpose.msra.mxu0 0
        %980 = vmatprep.subr.bf16.mxu0 0
        %981 = vmatpush2.bf16.xpose.msra.mxu0 0
        %982 = vmatprep.subr.bf16.mxu0 0
        %983 = vmatpush2.bf16.xpose.msra.mxu0 0
        %984 = vmatprep.subr.bf16.mxu0 0
        %985 = vmatpush2.bf16.xpose.msra.mxu0 0
        %986 = vmatprep.subr.bf16.mxu0 0
        %987 = vmatpush2.bf16.xpose.msra.mxu0 0
        %988 = vmatprep.subr.bf16.mxu0 0
        %989 = vmatpush2.bf16.xpose.msra.mxu0 0
        %990 = vmatprep.subr.bf16.mxu0 0
        %991 = vmatpush2.bf16.xpose.msra.mxu0 0
        %992 = vmatprep.mubr.bf16.mxu0 0
        %993 = vmatmul.mubr.bf16.gmra.mxu0 %v955
        %v994 = vpop.f32.mrf.mxu0
        %v995 = vadd.f32 0.0, %v994
        %v996 = vpop.f32.mrf.mxu0
        %v997 = vpop.f32.mrf.mxu0
        %v998 = vadd.f32 0.0, %v997
        %v999 = vpop.f32.mrf.mxu0
        %1000 = vdwg.mxu0
        %v1001 = vmul.f32 %v995, 0.17677669
        %v1002 = vmul.f32 %v998, 0.17677669
        %v1003 = vadd.f32 %v1001, %v868
        %v1004 = vadd.f32 %v1002, %v868
        %v1005 = vsel %vm872, %v1003, -inf
        %1006 = vmax.xlane.f32.xlu0 %v1005
        %v1007 = vpop.xlane.xlu0 %1006
        %v1008 = vsel %vm876, %v1004, -inf
        %1009 = vmax.xlane.f32.xlu0 %v1008
        %v1010 = vpop.xlane.xlu0 %1009
        %v1011 = vsub.f32 %v1003, %v1007
        %v1012 = vsub.f32 %v1004, %v1010
        %v1013 = vmul.f32 %v1011, 1.442695
        %v1014 = vpow.pop %v1013
        %v1015 = vmul.f32 %v1012, 1.442695
        %v1016 = vpow.pop %v1015
        %v1017 = vsel %vm872, %v1014, 0.0
        %1018 = vadd.xlane.f32.xlu0 %v1017
        %v1019 = vpop.xlane.xlu0 %1018
        %v1020 = vsel %vm876, %v1016, 0.0
        %1021 = vadd.xlane.f32.xlu0 %v1020
        %v1022 = vpop.xlane.xlu0 %1021
        %v1023 = vrcp.pop %v1019
        %v1024 = vrcp.pop %v1022
        %v1025 = vmul.f32 %v1014, %v1023
        %v1026 = vmul.f32 %v1016, %v1024
        %v1027 = vpack.c.bf16 %v1026, %v1025
        %1029 = vrot.lane.b32.xlu0 %v813, 96
        %v1030 = vpop.permute.xlu0 %1029
        %v1032 = vsel %vm872, %v1027, 0
        %v1035 = vand.u32 %v1030, %v903
        %1037 = vmatprep.subr.bf16.mxu0 0
        %1038 = vmatpush1.bf16.msra.mxu0 0
        %1039 = vmatprep.subr.bf16.mxu0 0
        %1040 = vmatpush1.bf16.msra.mxu0 0
        %1041 = vmatprep.subr.bf16.mxu0 0
        %1042 = vmatpush1.bf16.msra.mxu0 0
        %1043 = vmatprep.subr.bf16.mxu0 0
        %1044 = vmatpush1.bf16.msra.mxu0 0
        %1045 = vmatprep.subr.bf16.mxu0 0
        %1046 = vmatpush1.bf16.msra.mxu0 0
        %1047 = vmatprep.subr.bf16.mxu0 0
        %1048 = vmatpush1.bf16.msra.mxu0 0
        %1049 = vmatprep.subr.bf16.mxu0 0
        %1050 = vmatpush1.bf16.msra.mxu0 0
        %1051 = vmatprep.subr.bf16.mxu0 0
        %1052 = vmatpush1.bf16.msra.mxu0 %v1035
        %1053 = vmatprep.subr.bf16.mxu0 0
        %1054 = vmatpush2.bf16.msra.mxu0 0
        %1055 = vmatprep.subr.bf16.mxu0 0
        %1056 = vmatpush2.bf16.msra.mxu0 0
        %1057 = vmatprep.subr.bf16.mxu0 0
        %1058 = vmatpush2.bf16.msra.mxu0 0
        %1059 = vmatprep.subr.bf16.mxu0 0
        %1060 = vmatpush2.bf16.msra.mxu0 0
        %1061 = vmatprep.subr.bf16.mxu0 0
        %1062 = vmatpush2.bf16.msra.mxu0 0
        %1063 = vmatprep.subr.bf16.mxu0 0
        %1064 = vmatpush2.bf16.msra.mxu0 0
        %1065 = vmatprep.subr.bf16.mxu0 0
        %1066 = vmatpush2.bf16.msra.mxu0 0
        %1067 = vmatprep.subr.bf16.mxu0 0
        %1068 = vmatpush2.bf16.msra.mxu0 0
        %1069 = vmatprep.mubr.bf16.mxu0 0
        %1070 = vmatmul.mubr.bf16.gmra.mxu0 %v1032
        %v1071 = vpop.f32.mrf.mxu0
        %v1072 = vadd.f32 0.0, %v1071
        %v1073 = vpop.f32.mrf.mxu0
        %v1074 = vpop.f32.mrf.mxu0
        %v1075 = vadd.f32 0.0, %v1074
        %v1076 = vpop.f32.mrf.mxu0
        %1077 = vdwg.mxu0
        %1078 = vrot.lane.b32.xlu0 %v811, 64
        %v1079 = vpop.permute.xlu0 %1078
        %1080 = vrot.lane.b32.xlu0 %v812, 64
        %v1081 = vpop.permute.xlu0 %1080
        %v1083 = vsel %vm814, %v1079, 0
        %v1086 = vsel %vm814, %v1081, 0
        %1088 = vmatprep.subr.bf16.mxu0 0
        %1089 = vmatpush1.bf16.xpose.msra.mxu0 0
        %1090 = vmatprep.subr.bf16.mxu0 0
        %1091 = vmatpush1.bf16.xpose.msra.mxu0 0
        %1092 = vmatprep.subr.bf16.mxu0 0
        %1093 = vmatpush1.bf16.xpose.msra.mxu0 0
        %1094 = vmatprep.subr.bf16.mxu0 0
        %1095 = vmatpush1.bf16.xpose.msra.mxu0 0
        %1096 = vmatprep.subr.bf16.mxu0 0
        %1097 = vmatpush1.bf16.xpose.msra.mxu0 0
        %1098 = vmatprep.subr.bf16.mxu0 0
        %1099 = vmatpush1.bf16.xpose.msra.mxu0 0
        %1100 = vmatprep.subr.bf16.mxu0 0
        %1101 = vmatpush1.bf16.xpose.msra.mxu0 0
        %1102 = vmatprep.subr.bf16.mxu0 0
        %1103 = vmatpush1.bf16.xpose.msra.mxu0 %v1086
        %1104 = vmatprep.subr.bf16.mxu0 0
        %1105 = vmatpush2.bf16.xpose.msra.mxu0 0
        %1106 = vmatprep.subr.bf16.mxu0 0
        %1107 = vmatpush2.bf16.xpose.msra.mxu0 0
        %1108 = vmatprep.subr.bf16.mxu0 0
        %1109 = vmatpush2.bf16.xpose.msra.mxu0 0
        %1110 = vmatprep.subr.bf16.mxu0 0
        %1111 = vmatpush2.bf16.xpose.msra.mxu0 0
        %1112 = vmatprep.subr.bf16.mxu0 0
        %1113 = vmatpush2.bf16.xpose.msra.mxu0 0
        %1114 = vmatprep.subr.bf16.mxu0 0
        %1115 = vmatpush2.bf16.xpose.msra.mxu0 0
        %1116 = vmatprep.subr.bf16.mxu0 0
        %1117 = vmatpush2.bf16.xpose.msra.mxu0 0
        %1118 = vmatprep.subr.bf16.mxu0 0
        %1119 = vmatpush2.bf16.xpose.msra.mxu0 0
        %1120 = vmatprep.mubr.bf16.mxu0 0
        %1121 = vmatmul.mubr.bf16.gmra.mxu0 %v1083
        %v1122 = vpop.f32.mrf.mxu0
        %v1123 = vadd.f32 0.0, %v1122
        %v1124 = vpop.f32.mrf.mxu0
        %v1125 = vpop.f32.mrf.mxu0
        %v1126 = vadd.f32 0.0, %v1125
        %v1127 = vpop.f32.mrf.mxu0
        %1128 = vdwg.mxu0
        %v1129 = vmul.f32 %v1123, 0.17677669
        %v1130 = vmul.f32 %v1126, 0.17677669
        %v1131 = vadd.f32 %v1129, %v868
        %v1132 = vadd.f32 %v1130, %v868
        %v1133 = vsel %vm872, %v1131, -inf
        %1134 = vmax.xlane.f32.xlu0 %v1133
        %v1135 = vpop.xlane.xlu0 %1134
        %v1136 = vsel %vm876, %v1132, -inf
        %1137 = vmax.xlane.f32.xlu0 %v1136
        %v1138 = vpop.xlane.xlu0 %1137
        %v1139 = vsub.f32 %v1131, %v1135
        %v1140 = vsub.f32 %v1132, %v1138
        %v1141 = vmul.f32 %v1139, 1.442695
        %v1142 = vpow.pop %v1141
        %v1143 = vmul.f32 %v1140, 1.442695
        %v1144 = vpow.pop %v1143
        %v1145 = vsel %vm872, %v1142, 0.0
        %1146 = vadd.xlane.f32.xlu0 %v1145
        %v1147 = vpop.xlane.xlu0 %1146
        %v1148 = vsel %vm876, %v1144, 0.0
        %1149 = vadd.xlane.f32.xlu0 %v1148
        %v1150 = vpop.xlane.xlu0 %1149
        %v1151 = vrcp.pop %v1147
        %v1152 = vrcp.pop %v1150
        %v1153 = vmul.f32 %v1142, %v1151
        %v1154 = vmul.f32 %v1144, %v1152
        %v1155 = vpack.c.bf16 %v1154, %v1153
        %1156 = vrot.lane.b32.xlu0 %v813, 64
        %v1157 = vpop.permute.xlu0 %1156
        %v1159 = vsel %vm872, %v1155, 0
        %v1162 = vand.u32 %v1157, %v903
        %1164 = vmatprep.subr.bf16.mxu0 0
        %1165 = vmatpush1.bf16.msra.mxu0 0
        %1166 = vmatprep.subr.bf16.mxu0 0
        %1167 = vmatpush1.bf16.msra.mxu0 0
        %1168 = vmatprep.subr.bf16.mxu0 0
        %1169 = vmatpush1.bf16.msra.mxu0 0
        %1170 = vmatprep.subr.bf16.mxu0 0
        %1171 = vmatpush1.bf16.msra.mxu0 0
        %1172 = vmatprep.subr.bf16.mxu0 0
        %1173 = vmatpush1.bf16.msra.mxu0 0
        %1174 = vmatprep.subr.bf16.mxu0 0
        %1175 = vmatpush1.bf16.msra.mxu0 0
        %1176 = vmatprep.subr.bf16.mxu0 0
        %1177 = vmatpush1.bf16.msra.mxu0 0
        %1178 = vmatprep.subr.bf16.mxu0 0
        %1179 = vmatpush1.bf16.msra.mxu0 %v1162
        %1180 = vmatprep.subr.bf16.mxu0 0
        %1181 = vmatpush2.bf16.msra.mxu0 0
        %1182 = vmatprep.subr.bf16.mxu0 0
        %1183 = vmatpush2.bf16.msra.mxu0 0
        %1184 = vmatprep.subr.bf16.mxu0 0
        %1185 = vmatpush2.bf16.msra.mxu0 0
        %1186 = vmatprep.subr.bf16.mxu0 0
        %1187 = vmatpush2.bf16.msra.mxu0 0
        %1188 = vmatprep.subr.bf16.mxu0 0
        %1189 = vmatpush2.bf16.msra.mxu0 0
        %1190 = vmatprep.subr.bf16.mxu0 0
        %1191 = vmatpush2.bf16.msra.mxu0 0
        %1192 = vmatprep.subr.bf16.mxu0 0
        %1193 = vmatpush2.bf16.msra.mxu0 0
        %1194 = vmatprep.subr.bf16.mxu0 0
        %1195 = vmatpush2.bf16.msra.mxu0 0
        %1196 = vmatprep.mubr.bf16.mxu0 0
        %1197 = vmatmul.mubr.bf16.gmra.mxu0 %v1159
        %v1198 = vpop.f32.mrf.mxu0
        %v1199 = vadd.f32 0.0, %v1198
        %v1200 = vpop.f32.mrf.mxu0
        %v1201 = vpop.f32.mrf.mxu0
        %v1202 = vadd.f32 0.0, %v1201
        %v1203 = vpop.f32.mrf.mxu0
        %1204 = vdwg.mxu0
        %1205 = vrot.lane.b32.xlu0 %v811, 32
        %v1206 = vpop.permute.xlu0 %1205
        %1207 = vrot.lane.b32.xlu0 %v812, 32
        %v1208 = vpop.permute.xlu0 %1207
        %v1210 = vsel %vm814, %v1206, 0
        %v1213 = vsel %vm814, %v1208, 0
        %1215 = vmatprep.subr.bf16.mxu0 0
        %1216 = vmatpush1.bf16.xpose.msra.mxu0 0
        %1217 = vmatprep.subr.bf16.mxu0 0
        %1218 = vmatpush1.bf16.xpose.msra.mxu0 0
        %1219 = vmatprep.subr.bf16.mxu0 0
        %1220 = vmatpush1.bf16.xpose.msra.mxu0 0
        %1221 = vmatprep.subr.bf16.mxu0 0
        %1222 = vmatpush1.bf16.xpose.msra.mxu0 0
        %1223 = vmatprep.subr.bf16.mxu0 0
        %1224 = vmatpush1.bf16.xpose.msra.mxu0 0
        %1225 = vmatprep.subr.bf16.mxu0 0
        %1226 = vmatpush1.bf16.xpose.msra.mxu0 0
        %1227 = vmatprep.subr.bf16.mxu0 0
        %1228 = vmatpush1.bf16.xpose.msra.mxu0 0
        %1229 = vmatprep.subr.bf16.mxu0 0
        %1230 = vmatpush1.bf16.xpose.msra.mxu0 %v1213
        %1231 = vmatprep.subr.bf16.mxu0 0
        %1232 = vmatpush2.bf16.xpose.msra.mxu0 0
        %1233 = vmatprep.subr.bf16.mxu0 0
        %1234 = vmatpush2.bf16.xpose.msra.mxu0 0
        %1235 = vmatprep.subr.bf16.mxu0 0
        %1236 = vmatpush2.bf16.xpose.msra.mxu0 0
        %1237 = vmatprep.subr.bf16.mxu0 0
        %1238 = vmatpush2.bf16.xpose.msra.mxu0 0
        %1239 = vmatprep.subr.bf16.mxu0 0
        %1240 = vmatpush2.bf16.xpose.msra.mxu0 0
        %1241 = vmatprep.subr.bf16.mxu0 0
        %1242 = vmatpush2.bf16.xpose.msra.mxu0 0
        %1243 = vmatprep.subr.bf16.mxu0 0
        %1244 = vmatpush2.bf16.xpose.msra.mxu0 0
        %1245 = vmatprep.subr.bf16.mxu0 0
        %1246 = vmatpush2.bf16.xpose.msra.mxu0 0
        %1247 = vmatprep.mubr.bf16.mxu0 0
        %1248 = vmatmul.mubr.bf16.gmra.mxu0 %v1210
        %v1249 = vpop.f32.mrf.mxu0
        %v1250 = vadd.f32 0.0, %v1249
        %v1251 = vpop.f32.mrf.mxu0
        %v1252 = vpop.f32.mrf.mxu0
        %v1253 = vadd.f32 0.0, %v1252
        %v1254 = vpop.f32.mrf.mxu0
        %1255 = vdwg.mxu0
        %v1256 = vmul.f32 %v1250, 0.17677669
        %v1257 = vmul.f32 %v1253, 0.17677669
        %v1258 = vadd.f32 %v1256, %v868
        %v1259 = vadd.f32 %v1257, %v868
        %v1260 = vsel %vm872, %v1258, -inf
        %1261 = vmax.xlane.f32.xlu0 %v1260
        %v1262 = vpop.xlane.xlu0 %1261
        %v1263 = vsel %vm876, %v1259, -inf
        %1264 = vmax.xlane.f32.xlu0 %v1263
        %v1265 = vpop.xlane.xlu0 %1264
        %v1266 = vsub.f32 %v1258, %v1262
        %v1267 = vsub.f32 %v1259, %v1265
        %v1268 = vmul.f32 %v1266, 1.442695
        %v1269 = vpow.pop %v1268
        %v1270 = vmul.f32 %v1267, 1.442695
        %v1271 = vpow.pop %v1270
        %v1272 = vsel %vm872, %v1269, 0.0
        %1273 = vadd.xlane.f32.xlu0 %v1272
        %v1274 = vpop.xlane.xlu0 %1273
        %v1275 = vsel %vm876, %v1271, 0.0
        %1276 = vadd.xlane.f32.xlu0 %v1275
        %v1277 = vpop.xlane.xlu0 %1276
        %v1278 = vrcp.pop %v1274
        %v1279 = vrcp.pop %v1277
        %v1280 = vmul.f32 %v1269, %v1278
        %v1281 = vmul.f32 %v1271, %v1279
        %v1282 = vpack.c.bf16 %v1281, %v1280
        %1283 = vrot.lane.b32.xlu0 %v813, 32
        %v1284 = vpop.permute.xlu0 %1283
        %v1286 = vsel %vm872, %v1282, 0
        %v1289 = vand.u32 %v1284, %v903
        %1291 = vmatprep.subr.bf16.mxu0 0
        %1292 = vmatpush1.bf16.msra.mxu0 0
        %1293 = vmatprep.subr.bf16.mxu0 0
        %1294 = vmatpush1.bf16.msra.mxu0 0
        %1295 = vmatprep.subr.bf16.mxu0 0
        %1296 = vmatpush1.bf16.msra.mxu0 0
        %1297 = vmatprep.subr.bf16.mxu0 0
        %1298 = vmatpush1.bf16.msra.mxu0 0
        %1299 = vmatprep.subr.bf16.mxu0 0
        %1300 = vmatpush1.bf16.msra.mxu0 0
        %1301 = vmatprep.subr.bf16.mxu0 0
        %1302 = vmatpush1.bf16.msra.mxu0 0
        %1303 = vmatprep.subr.bf16.mxu0 0
        %1304 = vmatpush1.bf16.msra.mxu0 0
        %1305 = vmatprep.subr.bf16.mxu0 0
        %1306 = vmatpush1.bf16.msra.mxu0 %v1289
        %1307 = vmatprep.subr.bf16.mxu0 0
        %1308 = vmatpush2.bf16.msra.mxu0 0
        %1309 = vmatprep.subr.bf16.mxu0 0
        %1310 = vmatpush2.bf16.msra.mxu0 0
        %1311 = vmatprep.subr.bf16.mxu0 0
        %1312 = vmatpush2.bf16.msra.mxu0 0
        %1313 = vmatprep.subr.bf16.mxu0 0
        %1314 = vmatpush2.bf16.msra.mxu0 0
        %1315 = vmatprep.subr.bf16.mxu0 0
        %1316 = vmatpush2.bf16.msra.mxu0 0
        %1317 = vmatprep.subr.bf16.mxu0 0
        %1318 = vmatpush2.bf16.msra.mxu0 0
        %1319 = vmatprep.subr.bf16.mxu0 0
        %1320 = vmatpush2.bf16.msra.mxu0 0
        %1321 = vmatprep.subr.bf16.mxu0 0
        %1322 = vmatpush2.bf16.msra.mxu0 0
        %1323 = vmatprep.mubr.bf16.mxu0 0
        %1324 = vmatmul.mubr.bf16.gmra.mxu0 %v1286
        %v1325 = vpop.f32.mrf.mxu0
        %v1326 = vadd.f32 0.0, %v1325
        %v1327 = vpop.f32.mrf.mxu0
        %v1328 = vpop.f32.mrf.mxu0
        %v1329 = vadd.f32 0.0, %v1328
        %v1330 = vpop.f32.mrf.mxu0
        %1331 = vdwg.mxu0
        %1334 = vrot.lane.b32.xlu0 %v1072, 32
        %v1335 = vpop.permute.xlu0 %1334
        %1336 = vrot.lane.b32.xlu0 %v1075, 32
        %v1337 = vpop.permute.xlu0 %1336
        %1342 = vrot.lane.b32.xlu0 %v1199, 64
        %v1343 = vpop.permute.xlu0 %1342
        %1344 = vrot.lane.b32.xlu0 %v1202, 64
        %v1345 = vpop.permute.xlu0 %1344
        %1350 = vrot.lane.b32.xlu0 %v1326, 96
        %v1351 = vpop.permute.xlu0 %1350
        %1352 = vrot.lane.b32.xlu0 %v1329, 96
        %v1353 = vpop.permute.xlu0 %1352
        %v1356 = vsel %vm814, %v942, %v1335
        %v1357 = vsel %vm814, %v945, %v1337
        %vm1358 = vcmask 523264
        %v1359 = vsel %vm1358, %v1356, %v1343
        %v1360 = vsel %vm1358, %v1357, %v1345
        %vm1361 = vcmask 785408
        %v1362 = vsel %vm1361, %v1359, %v1351
        %v1363 = vsel %vm1361, %v1360, %v1353
        %v1364 = vpack.c.bf16 %v1363, %v1362
        %v1365 = vld [vmem:[#allocation6] sm:$0xf]
        %v1366 = vld [vmem:[#allocation6 + $0x4] sm:$0xf]
        %v1367 = vld [vmem:[#allocation6 + $0x8] sm:$0xf]
        %v1368 = vld [vmem:[#allocation6 + $0xc] sm:$0xf]
        %v1369 = vld [vmem:[#allocation6 + $0x10] sm:$0xf]
        %v1370 = vld [vmem:[#allocation6 + $0x14] sm:$0xf]
        %v1371 = vld [vmem:[#allocation6 + $0x18] sm:$0xf]
        %v1372 = vld [vmem:[#allocation6 + $0x1c] sm:$0xf]
        %v1373 = vld [vmem:[#allocation6 + $0x20] sm:$0xf]
        %v1374 = vld [vmem:[#allocation6 + $0x24] sm:$0xf]
        %v1375 = vld [vmem:[#allocation6 + $0x28] sm:$0xf]
        %v1376 = vld [vmem:[#allocation6 + $0x2c] sm:$0xf]
        %v1377 = vld [vmem:[#allocation6 + $0x30] sm:$0xf]
        %v1378 = vld [vmem:[#allocation6 + $0x34] sm:$0xf]
        %v1379 = vld [vmem:[#allocation6 + $0x38] sm:$0xf]
        %v1380 = vld [vmem:[#allocation6 + $0x3c] sm:$0xf]
        %v1381 = vld [vmem:[%s10] sm:$0x1]
        %v1383 = vlaneseq
        %v1384 = vshrl.u32 %v1383, 7
        %v1385 = vsub.s32 0, %v1384
        %v1386 = vrot.slane %v1381, %v1385
        %v1404 = vunpack.c.l.b16 %v1365
        %v1405 = vunpack.c.l.b16 %v1366
        %v1406 = vunpack.c.l.b16 %v1367
        %v1407 = vunpack.c.l.b16 %v1368
        %v1408 = vunpack.c.l.b16 %v1369
        %v1409 = vunpack.c.l.b16 %v1370
        %v1410 = vunpack.c.l.b16 %v1371
        %v1411 = vunpack.c.l.b16 %v1372
        %v1412 = vunpack.c.l.b16 %v1373
        %v1413 = vunpack.c.l.b16 %v1374
        %v1414 = vunpack.c.l.b16 %v1375
        %v1415 = vunpack.c.l.b16 %v1376
        %v1416 = vunpack.c.l.b16 %v1377
        %v1417 = vunpack.c.l.b16 %v1378
        %v1418 = vunpack.c.l.b16 %v1379
        %v1419 = vunpack.c.l.b16 %v1380
        %v1420 = vpack.c.b16 %v1405, %v1404
        %v1421 = vpack.c.b16 %v1407, %v1406
        %v1422 = vpack.c.b16 %v1409, %v1408
        %v1423 = vpack.c.b16 %v1411, %v1410
        %v1424 = vpack.c.b16 %v1413, %v1412
        %v1425 = vpack.c.b16 %v1415, %v1414
        %v1426 = vpack.c.b16 %v1417, %v1416
        %v1427 = vpack.c.b16 %v1419, %v1418
        %1436 = vmatprep.subr.bf16.mxu0 0
        %1437 = vmatpush1.bf16.msra.mxu0 %v1427
        %1438 = vmatprep.subr.bf16.mxu0 0
        %1439 = vmatpush1.bf16.msra.mxu0 %v1426
        %1440 = vmatprep.subr.bf16.mxu0 0
        %1441 = vmatpush1.bf16.msra.mxu0 %v1425
        %1442 = vmatprep.subr.bf16.mxu0 0
        %1443 = vmatpush1.bf16.msra.mxu0 %v1424
        %1444 = vmatprep.subr.bf16.mxu0 0
        %1445 = vmatpush1.bf16.msra.mxu0 %v1423
        %1446 = vmatprep.subr.bf16.mxu0 0
        %1447 = vmatpush1.bf16.msra.mxu0 %v1422
        %1448 = vmatprep.subr.bf16.mxu0 0
        %1449 = vmatpush1.bf16.msra.mxu0 %v1421
        %1450 = vmatprep.subr.bf16.mxu0 0
        %1451 = vmatpush1.bf16.msra.mxu0 %v1420
        %1452 = vmatprep.subr.bf16.mxu0 0
        %1453 = vmatpush2.bf16.msra.mxu0 0
        %1454 = vmatprep.subr.bf16.mxu0 0
        %1455 = vmatpush2.bf16.msra.mxu0 0
        %1456 = vmatprep.subr.bf16.mxu0 0
        %1457 = vmatpush2.bf16.msra.mxu0 0
        %1458 = vmatprep.subr.bf16.mxu0 0
        %1459 = vmatpush2.bf16.msra.mxu0 0
        %1460 = vmatprep.subr.bf16.mxu0 0
        %1461 = vmatpush2.bf16.msra.mxu0 0
        %1462 = vmatprep.subr.bf16.mxu0 0
        %1463 = vmatpush2.bf16.msra.mxu0 0
        %1464 = vmatprep.subr.bf16.mxu0 0
        %1465 = vmatpush2.bf16.msra.mxu0 0
        %1466 = vmatprep.subr.bf16.mxu0 0
        %1467 = vmatpush2.bf16.msra.mxu0 0
        %1468 = vmatprep.mubr.bf16.mxu0 0
        %1469 = vmatmul.mubr.bf16.gmra.mxu0 %v1364
        %v1470 = vpop.f32.mrf.mxu0
        %v1471 = vadd.f32 %v1386, %v1470
        %v1472 = vpop.f32.mrf.mxu0
        %v1473 = vpop.f32.mrf.mxu0
        %v1474 = vadd.f32 %v1386, %v1473
        %v1475 = vpop.f32.mrf.mxu0
        %1476 = vdwg.mxu0
        %v1477 = vadd.f32 %v466, %v1471
        %v1478 = vadd.f32 %v467, %v1474
        %1479 = vst [vmem:[%s464] sm:$0xff] %v1477
        %1480 = vst [vmem:[%s464 + $0x8] sm:$0x7] %v1478
        %p1481 = scmp.lt.s32.totalorder %s24, 1
        %s1482 = scalar_select %p1481, %s24, 1
        %s1483 = smul.addr %s1482, 2
        %s1484 = smul.addr %s1483, 8
        %s1485 = scalar_lea.vmem %s11, %s1484
        // Predicated region
        $region77: #{tpu_custom_call.1} parent=63 // pred_check
          %p1486 = pneg %p288
        $region78: #{tpu_custom_call.1} parent=63 // pred_check_branch
          %1488 = sbr.rel (%p1486) target = $region80
        $region79: #{tpu_custom_call.1} parent=63 // pred_region
          _
        $region80: #{tpu_custom_call.1} parent=63 // pred_fallthru
          _
      $region64: #{tpu_custom_call.1} parent=5 // pred_fallthru
        _
      %p1489 = scmp.le.s32.totalorder 2, %s19
      // Predicated region
      $region81: #{tpu_custom_call.1} parent=5 // pred_check
        %p1490 = pneg %p1489
      $region82: #{tpu_custom_call.1} parent=5 // pred_check_branch
        %1492 = sbr.rel (%p1490) target = $region84
      $region83: #{tpu_custom_call.1} parent=5 // pred_region
        %s1493 = ssub.s32 %s19, 2
        // Predicated region
        $region85: #{tpu_custom_call.1} parent=83 // pred_check
          %p1494 = pneg %p294
        $region86: #{tpu_custom_call.1} parent=83 // pred_check_branch
          %1496 = sbr.rel (%p1494) target = $region88
        $region87: #{tpu_custom_call.1} parent=83 // pred_region
          %p1497 = scmp.lt.s32.totalorder %s25, 1
          %s1498 = scalar_select %p1497, %s25, 1
          %s1499 = smul.addr %s1498, 2
          %s1500 = smul.addr %s1499, 8
          %s1501 = scalar_lea.vmem %s11, %s1500
        $region88: #{tpu_custom_call.1} parent=83 // pred_fallthru
          _
      $region84: #{tpu_custom_call.1} parent=5 // pred_fallthru
        _
    $region6: #{tpu_custom_call.1} parent=1 // loop_footer
      %s23 = sadd.s32 1, %s19
    $region7: #{tpu_custom_call.1} parent=1 // loop_footer_branch
      %18 = sbr.rel target = $region3
    $region8: #{tpu_custom_call.1} parent=1 // loop_exit
      _
    %1502 = vsyncpa [#allocation3], 1
    %s1503 = scalar_lea.sflag [#allocation3], 1
    %1504 = vsyncpa %s1503, 1
    %1505 = vsyncpa [#allocation5], 1

</llo_original>
